<compile_context>
chip_gen: v7x
topology: tpu7x:2x2x1
jax: 0.10.0
libtpu: 0.0.40
codegen_flags: <defaults>
</compile_context>

<pallas_src>
import functools

import jax
import jax.numpy as jnp
from jax.experimental import pallas as pl
from jax.experimental.pallas import tpu as pltpu


def _round_up(x, m):
    return ((x + m - 1) // m) * m


def _pick_row_tile(Ho, Wo):
    """Largest divisor of Ho such that TH*Wo ~<= 128 (good MXU M dim, >1 grid step)."""
    target = max(1, 128 // max(Wo, 1))
    th = 1
    for d in range(1, Ho + 1):
        if Ho % d == 0 and d <= target:
            th = d
    return th


def conv_bn_relu_kernel(x_ref, w_ref, bias_ref, o_ref, *, stride):
    """One (batch, output-row-band) tile per grid step.

    x_ref:    (1, Hp, Wp, Cin_pad)     zero-padded input image (resident across bands)
    w_ref:    (KH, KW, Cin_pad, Cpad)  conv weights with BN scale folded in
    bias_ref: (1, Cpad)                folded BN bias  = beta - mean * gamma / sqrt(var+eps)
    o_ref:    (1, TH, Wo, Cpad)        output row band (lane-dense: Cpad == 128*k)
    """
    KH, KW, Cin_p, Cp = w_ref.shape
    _, TH, Wo, _ = o_ref.shape

    hb = pl.program_id(1)
    row0 = pl.multiple_of(hb * (TH * stride), TH * stride)

    row_span = (TH - 1) * stride + 1
    col_span = (Wo - 1) * stride + 1

    # f32 register accumulator for this band: (TH*Wo, Cpad) = (128, 128) -> 64 KiB.
    acc = jnp.zeros((TH * Wo, Cp), jnp.float32)

    # Direct conv as KH*KW matmuls: each is (TH*Wo, Cin_pad) x (Cin_pad, Cpad) on the
    # MXU with full 128 result lanes. Slices come straight off the VMEM ref.
    for kh in range(KH):
        for kw in range(KW):
            xs = x_ref[0, pl.ds(row0 + kh, row_span), pl.ds(kw, col_span), :]
            if stride > 1:
                xs = xs[::stride, ::stride, :]
            acc = acc + jnp.dot(
                xs.reshape(TH * Wo, Cin_p),
                w_ref[kh, kw],
                preferred_element_type=jnp.float32,
            )

    # Folded-BN bias + ReLU, then a lane-dense (…,128) store.
    y = jnp.maximum(acc + bias_ref[0], 0.0)
    o_ref[0] = y.reshape(TH, Wo, Cp).astype(o_ref.dtype)


def conv_block(x_nchw, w_oihw, gamma, beta, running_mean, running_var,
               *, stride=1, padding=0, eps=1e-5):
    """ConvBlock forward: Conv2d(bias=False) -> BatchNorm2d(eval) -> ReLU.

    x_nchw : (N, Cin, H, W)       (PyTorch layout)
    w_oihw : (Cout, Cin, KH, KW)
    returns: (N, Cout, Ho, Wo) in NCHW.
    """
    N, Cin, H, W = x_nchw.shape
    Cout, _, KH, KW = w_oihw.shape
    Ho = (H + 2 * padding - KH) // stride + 1
    Wo = (W + 2 * padding - KW) // stride + 1
    Hp, Wp = H + 2 * padding, W + 2 * padding

    Cin_p = _round_up(Cin, 8)       # contraction dim -> multiple of 8 (sublane tile)
    Cp = _round_up(Cout, 128)       # result dim -> multiple of 128 (lane-dense stores)
    TH = _pick_row_tile(Ho, Wo)     # output row band
    n_hb = Ho // TH

    # Glue (layout + padding) in plain JAX.
    # TODO(synk): padding/transpose could be fused into the kernel to save an HBM pass.
    x = jnp.transpose(x_nchw, (0, 2, 3, 1))                          # NHWC
    x = jnp.pad(x, ((0, 0), (padding, padding), (padding, padding), (0, Cin_p - Cin)))

    # Fold eval-mode BN scale into the conv weights; keep only the bias for the kernel.
    inv_std = jax.lax.rsqrt(running_var.astype(jnp.float32) + eps)
    scale = gamma.astype(jnp.float32) * inv_std                      # (Cout,)
    bias = beta.astype(jnp.float32) - running_mean.astype(jnp.float32) * scale

    w = jnp.transpose(w_oihw, (2, 3, 1, 0)).astype(jnp.float32) * scale   # (KH,KW,Cin,Cout)
    w = jnp.pad(w, ((0, 0), (0, 0), (0, Cin_p - Cin), (0, Cp - Cout)))
    w = w.astype(x_nchw.dtype)      # keep MXU input dtype == activation dtype (bf16 stays bf16)
    bias_p = jnp.pad(bias, (0, Cp - Cout)).reshape(1, Cp)

    kern = functools.partial(conv_bn_relu_kernel, stride=stride)

    itemsize = jnp.dtype(x_nchw.dtype).itemsize
    cost = pl.CostEstimate(
        flops=2 * N * Ho * Wo * KH * KW * Cin_p * Cp,
        transcendentals=0,
        bytes_accessed=(x.size * itemsize + w.size * itemsize
                        + N * Ho * Wo * Cp * itemsize),
    )

    # VMEM budget (per grid step, double-buffered):
    #   2*(Hp*Wp*Cin_p) + KH*KW*Cin_p*Cp + 2*(TH*Wo*Cp) words  << 32 MiB for these shapes,
    # which is safe on v5e (16 MiB scoped default raised), v6e and v7x (64 MiB physical).
    out = pl.pallas_call(
        kern,
        out_shape=jax.ShapeDtypeStruct((N, Ho, Wo, Cp), x_nchw.dtype),
        grid_spec=pltpu.PrefetchScalarGridSpec(
            num_scalar_prefetch=0,
            grid=(N, n_hb),
            in_specs=[
                # Full padded image per batch element; stays resident across row bands.
                pl.BlockSpec((1, Hp, Wp, Cin_p), lambda n, h: (n, 0, 0, 0)),
                pl.BlockSpec((KH, KW, Cin_p, Cp), lambda n, h: (0, 0, 0, 0)),
                pl.BlockSpec((1, Cp), lambda n, h: (0, 0)),
            ],
            out_specs=pl.BlockSpec((1, TH, Wo, Cp), lambda n, h: (n, h, 0, 0)),
        ),
        compiler_params=pltpu.CompilerParams(
            dimension_semantics=("parallel", "parallel"),
            vmem_limit_bytes=32 * 1024 * 1024,
        ),
        cost_estimate=cost,
    )(x, w, bias_p)

    out = out[..., :Cout]                                            # drop Cout padding
    return jnp.transpose(out, (0, 3, 1, 2))                          # back to NCHW


def _reference(x_nchw, w_oihw, gamma, beta, running_mean, running_var,
               *, stride, padding, eps=1e-5):
    conv = jax.lax.conv_general_dilated(
        x_nchw.astype(jnp.float32), w_oihw.astype(jnp.float32),
        window_strides=(stride, stride),
        padding=[(padding, padding), (padding, padding)],
        dimension_numbers=("NCHW", "OIHW", "NCHW"),
    )
    inv_std = 1.0 / jnp.sqrt(running_var + eps)
    s = (gamma * inv_std)[None, :, None, None]
    b = (beta - running_mean * gamma * inv_std)[None, :, None, None]
    return jnp.maximum(conv * s + b, 0.0)


if __name__ == "__main__":
    # ConvBlock(in_planes=4, out_planes=8, kernel_size=3, stride=1, padding=1)
    N, Cin, H, W = 2, 4, 16, 16
    Cout, K, stride, padding = 8, 3, 1, 1

    key = jax.random.PRNGKey(0)
    kx, kw, km, kv = jax.random.split(key, 4)

    x = jax.random.normal(kx, (N, Cin, H, W), dtype=jnp.float32)
    w = jax.random.normal(kw, (Cout, Cin, K, K), dtype=jnp.float32) * 0.1
    gamma = jnp.ones((Cout,), jnp.float32)                           # BN weight init
    beta = jnp.zeros((Cout,), jnp.float32)                           # BN bias init
    running_mean = jax.random.normal(km, (Cout,), dtype=jnp.float32) * 0.05
    running_var = jnp.abs(jax.random.normal(kv, (Cout,), dtype=jnp.float32)) + 1.0

    out = conv_block(x, w, gamma, beta, running_mean, running_var,
                     stride=stride, padding=padding)
    out = jax.block_until_ready(out)

    ref = _reference(x, w, gamma, beta, running_mean, running_var,
                     stride=stride, padding=padding)
    assert out.shape == (N, Cout, H, W), out.shape
    assert jnp.allclose(out, ref, rtol=1e-4, atol=1e-4), \
        float(jnp.max(jnp.abs(out - ref)))

    print("KERNEL_OK")
</pallas_src>

<mosaic_0001>
module attributes {stable_mosaic.version = 11 : i64} {
  func.func @conv_bn_relu_kernel(%arg0: i32, %arg1: i32, %arg2: memref<1x18x18x8xf32, #tpu.memory_space<vmem>>, %arg3: memref<3x3x8x128xf32, #tpu.memory_space<vmem>>, %arg4: memref<1x128xf32, #tpu.memory_space<vmem>>, %arg5: memref<1x8x16x128xf32, #tpu.memory_space<vmem>>) attributes {dimension_semantics = [#tpu.dimension_semantics<parallel>, #tpu.dimension_semantics<parallel>], iteration_bounds = array<i64: 2, 2>, scalar_prefetch = 0 : i64, scratch_operands = 0 : i64, tpu.core_type = #tpu.core_type<tc>, window_params = [{transform_indices = @transform_0, window_bounds = array<i64: 1, 18, 18, 8>}, {pipeline_mode = #tpu.pipeline_mode<synchronous>, transform_indices = @transform_1, window_bounds = array<i64: 3, 3, 8, 128>}, {pipeline_mode = #tpu.pipeline_mode<synchronous>, transform_indices = @transform_2, window_bounds = array<i64: 1, 128>}, {transform_indices = @transform_3, window_bounds = array<i64: 1, 8, 16, 128>}]} {
    %c8_i32 = arith.constant 8 : i32
    %0 = arith.muli %arg1, %c8_i32 : i32
    %1 = tpu.assume_multiple %0, 8 : i32
    %cst = arith.constant 0.000000e+00 : f32
    %2 = vector.broadcast %cst : f32 to vector<128x128xf32>
    %c0_i32 = arith.constant 0 : i32
    %3 = arith.addi %1, %c0_i32 : i32
    %c0 = arith.constant 0 : index
    %4 = arith.index_cast %3 : i32 to index
    %c0_0 = arith.constant 0 : index
    %c0_1 = arith.constant 0 : index
    %5 = vector.load %arg2[%c0, %4, %c0_0, %c0_1] : memref<1x18x18x8xf32, #tpu.memory_space<vmem>>, vector<1x8x16x8xf32>
    %6 = vector.shape_cast %5 : vector<1x8x16x8xf32> to vector<8x16x8xf32>
    %7 = vector.shape_cast %6 : vector<8x16x8xf32> to vector<128x8xf32>
    %c0_2 = arith.constant 0 : index
    %c0_3 = arith.constant 0 : index
    %c0_4 = arith.constant 0 : index
    %c0_5 = arith.constant 0 : index
    %8 = vector.load %arg3[%c0_2, %c0_3, %c0_4, %c0_5] : memref<3x3x8x128xf32, #tpu.memory_space<vmem>>, vector<1x1x8x128xf32>
    %9 = vector.shape_cast %8 : vector<1x1x8x128xf32> to vector<8x128xf32>
    %cst_6 = arith.constant dense<0.000000e+00> : vector<128x128xf32>
    %10 = tpu.matmul %7, %9, %cst_6 {dimension_numbers = #tpu.dot_dimension_numbers<[1], [0], [0], [1], [0, 0, 1, 1], [], []>} : vector<128x8xf32>, vector<8x128xf32>, vector<128x128xf32> -> vector<128x128xf32>
    %11 = arith.addf %2, %10 : vector<128x128xf32>
    %c0_i32_7 = arith.constant 0 : i32
    %12 = arith.addi %1, %c0_i32_7 : i32
    %c0_8 = arith.constant 0 : index
    %13 = arith.index_cast %12 : i32 to index
    %c1 = arith.constant 1 : index
    %c0_9 = arith.constant 0 : index
    %14 = vector.load %arg2[%c0_8, %13, %c1, %c0_9] : memref<1x18x18x8xf32, #tpu.memory_space<vmem>>, vector<1x8x16x8xf32>
    %15 = vector.shape_cast %14 : vector<1x8x16x8xf32> to vector<8x16x8xf32>
    %16 = vector.shape_cast %15 : vector<8x16x8xf32> to vector<128x8xf32>
    %c0_10 = arith.constant 0 : index
    %c1_11 = arith.constant 1 : index
    %c0_12 = arith.constant 0 : index
    %c0_13 = arith.constant 0 : index
    %17 = vector.load %arg3[%c0_10, %c1_11, %c0_12, %c0_13] : memref<3x3x8x128xf32, #tpu.memory_space<vmem>>, vector<1x1x8x128xf32>
    %18 = vector.shape_cast %17 : vector<1x1x8x128xf32> to vector<8x128xf32>
    %cst_14 = arith.constant dense<0.000000e+00> : vector<128x128xf32>
    %19 = tpu.matmul %16, %18, %cst_14 {dimension_numbers = #tpu.dot_dimension_numbers<[1], [0], [0], [1], [0, 0, 1, 1], [], []>} : vector<128x8xf32>, vector<8x128xf32>, vector<128x128xf32> -> vector<128x128xf32>
    %20 = arith.addf %11, %19 : vector<128x128xf32>
    %c0_i32_15 = arith.constant 0 : i32
    %21 = arith.addi %1, %c0_i32_15 : i32
    %c0_16 = arith.constant 0 : index
    %22 = arith.index_cast %21 : i32 to index
    %c2 = arith.constant 2 : index
    %c0_17 = arith.constant 0 : index
    %23 = vector.load %arg2[%c0_16, %22, %c2, %c0_17] : memref<1x18x18x8xf32, #tpu.memory_space<vmem>>, vector<1x8x16x8xf32>
    %24 = vector.shape_cast %23 : vector<1x8x16x8xf32> to vector<8x16x8xf32>
    %25 = vector.shape_cast %24 : vector<8x16x8xf32> to vector<128x8xf32>
    %c0_18 = arith.constant 0 : index
    %c2_19 = arith.constant 2 : index
    %c0_20 = arith.constant 0 : index
    %c0_21 = arith.constant 0 : index
    %26 = vector.load %arg3[%c0_18, %c2_19, %c0_20, %c0_21] : memref<3x3x8x128xf32, #tpu.memory_space<vmem>>, vector<1x1x8x128xf32>
    %27 = vector.shape_cast %26 : vector<1x1x8x128xf32> to vector<8x128xf32>
    %cst_22 = arith.constant dense<0.000000e+00> : vector<128x128xf32>
    %28 = tpu.matmul %25, %27, %cst_22 {dimension_numbers = #tpu.dot_dimension_numbers<[1], [0], [0], [1], [0, 0, 1, 1], [], []>} : vector<128x8xf32>, vector<8x128xf32>, vector<128x128xf32> -> vector<128x128xf32>
    %29 = arith.addf %20, %28 : vector<128x128xf32>
    %c1_i32 = arith.constant 1 : i32
    %30 = arith.addi %1, %c1_i32 : i32
    %c0_23 = arith.constant 0 : index
    %31 = arith.index_cast %30 : i32 to index
    %c0_24 = arith.constant 0 : index
    %c0_25 = arith.constant 0 : index
    %32 = vector.load %arg2[%c0_23, %31, %c0_24, %c0_25] : memref<1x18x18x8xf32, #tpu.memory_space<vmem>>, vector<1x8x16x8xf32>
    %33 = vector.shape_cast %32 : vector<1x8x16x8xf32> to vector<8x16x8xf32>
    %34 = vector.shape_cast %33 : vector<8x16x8xf32> to vector<128x8xf32>
    %c1_26 = arith.constant 1 : index
    %c0_27 = arith.constant 0 : index
    %c0_28 = arith.constant 0 : index
    %c0_29 = arith.constant 0 : index
    %35 = vector.load %arg3[%c1_26, %c0_27, %c0_28, %c0_29] : memref<3x3x8x128xf32, #tpu.memory_space<vmem>>, vector<1x1x8x128xf32>
    %36 = vector.shape_cast %35 : vector<1x1x8x128xf32> to vector<8x128xf32>
    %cst_30 = arith.constant dense<0.000000e+00> : vector<128x128xf32>
    %37 = tpu.matmul %34, %36, %cst_30 {dimension_numbers = #tpu.dot_dimension_numbers<[1], [0], [0], [1], [0, 0, 1, 1], [], []>} : vector<128x8xf32>, vector<8x128xf32>, vector<128x128xf32> -> vector<128x128xf32>
    %38 = arith.addf %29, %37 : vector<128x128xf32>
    %c1_i32_31 = arith.constant 1 : i32
    %39 = arith.addi %1, %c1_i32_31 : i32
    %c0_32 = arith.constant 0 : index
    %40 = arith.index_cast %39 : i32 to index
    %c1_33 = arith.constant 1 : index
    %c0_34 = arith.constant 0 : index
    %41 = vector.load %arg2[%c0_32, %40, %c1_33, %c0_34] : memref<1x18x18x8xf32, #tpu.memory_space<vmem>>, vector<1x8x16x8xf32>
    %42 = vector.shape_cast %41 : vector<1x8x16x8xf32> to vector<8x16x8xf32>
    %43 = vector.shape_cast %42 : vector<8x16x8xf32> to vector<128x8xf32>
    %c1_35 = arith.constant 1 : index
    %c1_36 = arith.constant 1 : index
    %c0_37 = arith.constant 0 : index
    %c0_38 = arith.constant 0 : index
    %44 = vector.load %arg3[%c1_35, %c1_36, %c0_37, %c0_38] : memref<3x3x8x128xf32, #tpu.memory_space<vmem>>, vector<1x1x8x128xf32>
    %45 = vector.shape_cast %44 : vector<1x1x8x128xf32> to vector<8x128xf32>
    %cst_39 = arith.constant dense<0.000000e+00> : vector<128x128xf32>
    %46 = tpu.matmul %43, %45, %cst_39 {dimension_numbers = #tpu.dot_dimension_numbers<[1], [0], [0], [1], [0, 0, 1, 1], [], []>} : vector<128x8xf32>, vector<8x128xf32>, vector<128x128xf32> -> vector<128x128xf32>
    %47 = arith.addf %38, %46 : vector<128x128xf32>
    %c1_i32_40 = arith.constant 1 : i32
    %48 = arith.addi %1, %c1_i32_40 : i32
    %c0_41 = arith.constant 0 : index
    %49 = arith.index_cast %48 : i32 to index
    %c2_42 = arith.constant 2 : index
    %c0_43 = arith.constant 0 : index
    %50 = vector.load %arg2[%c0_41, %49, %c2_42, %c0_43] : memref<1x18x18x8xf32, #tpu.memory_space<vmem>>, vector<1x8x16x8xf32>
    %51 = vector.shape_cast %50 : vector<1x8x16x8xf32> to vector<8x16x8xf32>
    %52 = vector.shape_cast %51 : vector<8x16x8xf32> to vector<128x8xf32>
    %c1_44 = arith.constant 1 : index
    %c2_45 = arith.constant 2 : index
    %c0_46 = arith.constant 0 : index
    %c0_47 = arith.constant 0 : index
    %53 = vector.load %arg3[%c1_44, %c2_45, %c0_46, %c0_47] : memref<3x3x8x128xf32, #tpu.memory_space<vmem>>, vector<1x1x8x128xf32>
    %54 = vector.shape_cast %53 : vector<1x1x8x128xf32> to vector<8x128xf32>
    %cst_48 = arith.constant dense<0.000000e+00> : vector<128x128xf32>
    %55 = tpu.matmul %52, %54, %cst_48 {dimension_numbers = #tpu.dot_dimension_numbers<[1], [0], [0], [1], [0, 0, 1, 1], [], []>} : vector<128x8xf32>, vector<8x128xf32>, vector<128x128xf32> -> vector<128x128xf32>
    %56 = arith.addf %47, %55 : vector<128x128xf32>
    %c2_i32 = arith.constant 2 : i32
    %57 = arith.addi %1, %c2_i32 : i32
    %c0_49 = arith.constant 0 : index
    %58 = arith.index_cast %57 : i32 to index
    %c0_50 = arith.constant 0 : index
    %c0_51 = arith.constant 0 : index
    %59 = vector.load %arg2[%c0_49, %58, %c0_50, %c0_51] : memref<1x18x18x8xf32, #tpu.memory_space<vmem>>, vector<1x8x16x8xf32>
    %60 = vector.shape_cast %59 : vector<1x8x16x8xf32> to vector<8x16x8xf32>
    %61 = vector.shape_cast %60 : vector<8x16x8xf32> to vector<128x8xf32>
    %c2_52 = arith.constant 2 : index
    %c0_53 = arith.constant 0 : index
    %c0_54 = arith.constant 0 : index
    %c0_55 = arith.constant 0 : index
    %62 = vector.load %arg3[%c2_52, %c0_53, %c0_54, %c0_55] : memref<3x3x8x128xf32, #tpu.memory_space<vmem>>, vector<1x1x8x128xf32>
    %63 = vector.shape_cast %62 : vector<1x1x8x128xf32> to vector<8x128xf32>
    %cst_56 = arith.constant dense<0.000000e+00> : vector<128x128xf32>
    %64 = tpu.matmul %61, %63, %cst_56 {dimension_numbers = #tpu.dot_dimension_numbers<[1], [0], [0], [1], [0, 0, 1, 1], [], []>} : vector<128x8xf32>, vector<8x128xf32>, vector<128x128xf32> -> vector<128x128xf32>
    %65 = arith.addf %56, %64 : vector<128x128xf32>
    %c2_i32_57 = arith.constant 2 : i32
    %66 = arith.addi %1, %c2_i32_57 : i32
    %c0_58 = arith.constant 0 : index
    %67 = arith.index_cast %66 : i32 to index
    %c1_59 = arith.constant 1 : index
    %c0_60 = arith.constant 0 : index
    %68 = vector.load %arg2[%c0_58, %67, %c1_59, %c0_60] : memref<1x18x18x8xf32, #tpu.memory_space<vmem>>, vector<1x8x16x8xf32>
    %69 = vector.shape_cast %68 : vector<1x8x16x8xf32> to vector<8x16x8xf32>
    %70 = vector.shape_cast %69 : vector<8x16x8xf32> to vector<128x8xf32>
    %c2_61 = arith.constant 2 : index
    %c1_62 = arith.constant 1 : index
    %c0_63 = arith.constant 0 : index
    %c0_64 = arith.constant 0 : index
    %71 = vector.load %arg3[%c2_61, %c1_62, %c0_63, %c0_64] : memref<3x3x8x128xf32, #tpu.memory_space<vmem>>, vector<1x1x8x128xf32>
    %72 = vector.shape_cast %71 : vector<1x1x8x128xf32> to vector<8x128xf32>
    %cst_65 = arith.constant dense<0.000000e+00> : vector<128x128xf32>
    %73 = tpu.matmul %70, %72, %cst_65 {dimension_numbers = #tpu.dot_dimension_numbers<[1], [0], [0], [1], [0, 0, 1, 1], [], []>} : vector<128x8xf32>, vector<8x128xf32>, vector<128x128xf32> -> vector<128x128xf32>
    %74 = arith.addf %65, %73 : vector<128x128xf32>
    %c2_i32_66 = arith.constant 2 : i32
    %75 = arith.addi %1, %c2_i32_66 : i32
    %c0_67 = arith.constant 0 : index
    %76 = arith.index_cast %75 : i32 to index
    %c2_68 = arith.constant 2 : index
    %c0_69 = arith.constant 0 : index
    %77 = vector.load %arg2[%c0_67, %76, %c2_68, %c0_69] : memref<1x18x18x8xf32, #tpu.memory_space<vmem>>, vector<1x8x16x8xf32>
    %78 = vector.shape_cast %77 : vector<1x8x16x8xf32> to vector<8x16x8xf32>
    %79 = vector.shape_cast %78 : vector<8x16x8xf32> to vector<128x8xf32>
    %c2_70 = arith.constant 2 : index
    %c2_71 = arith.constant 2 : index
    %c0_72 = arith.constant 0 : index
    %c0_73 = arith.constant 0 : index
    %80 = vector.load %arg3[%c2_70, %c2_71, %c0_72, %c0_73] : memref<3x3x8x128xf32, #tpu.memory_space<vmem>>, vector<1x1x8x128xf32>
    %81 = vector.shape_cast %80 : vector<1x1x8x128xf32> to vector<8x128xf32>
    %cst_74 = arith.constant dense<0.000000e+00> : vector<128x128xf32>
    %82 = tpu.matmul %79, %81, %cst_74 {dimension_numbers = #tpu.dot_dimension_numbers<[1], [0], [0], [1], [0, 0, 1, 1], [], []>} : vector<128x8xf32>, vector<8x128xf32>, vector<128x128xf32> -> vector<128x128xf32>
    %83 = arith.addf %74, %82 : vector<128x128xf32>
    %c0_75 = arith.constant 0 : index
    %c0_76 = arith.constant 0 : index
    %84 = vector.load %arg4[%c0_75, %c0_76] : memref<1x128xf32, #tpu.memory_space<vmem>>, vector<1x128xf32>
    %85 = vector.shape_cast %84 : vector<1x128xf32> to vector<128xf32>
    %86 = vector.shape_cast %85 : vector<128xf32> to vector<1x128xf32>
    %87 = vector.broadcast %86 : vector<1x128xf32> to vector<128x128xf32>
    %88 = arith.addf %83, %87 : vector<128x128xf32>
    %cst_77 = arith.constant 0.000000e+00 : f32
    %89 = vector.broadcast %cst_77 : f32 to vector<128x128xf32>
    %90 = arith.maximumf %88, %89 : vector<128x128xf32>
    %91 = vector.shape_cast %90 : vector<128x128xf32> to vector<8x16x128xf32>
    %c0_78 = arith.constant 0 : index
    %c0_79 = arith.constant 0 : index
    %c0_80 = arith.constant 0 : index
    %c0_81 = arith.constant 0 : index
    %92 = vector.load %arg5[%c0_78, %c0_79, %c0_80, %c0_81] : memref<1x8x16x128xf32, #tpu.memory_space<vmem>>, vector<1x8x16x128xf32>
    %93 = vector.shape_cast %92 : vector<1x8x16x128xf32> to vector<8x16x128xf32>
    %94 = vector.shape_cast %91 : vector<8x16x128xf32> to vector<1x8x16x128xf32>
    tpu.vector_store %arg5[%c0_78, %c0_79, %c0_80, %c0_81], %94 {strides = array<i32>} : memref<1x8x16x128xf32, #tpu.memory_space<vmem>>, vector<1x8x16x128xf32>,
    return
  }
  func.func @transform_0(%arg0: i32, %arg1: i32) -> (i32, i32, i32, i32) {
    %c0_i32 = arith.constant 0 : i32
    %c0_i32_0 = arith.constant 0 : i32
    %c0_i32_1 = arith.constant 0 : i32
    %c0_i32_2 = arith.constant 0 : i32
    return %arg0, %c0_i32, %c0_i32_0, %c0_i32_1 : i32, i32, i32, i32
  }
  func.func @transform_1(%arg0: i32, %arg1: i32) -> (i32, i32, i32, i32) {
    %c0_i32 = arith.constant 0 : i32
    %c0_i32_0 = arith.constant 0 : i32
    %c0_i32_1 = arith.constant 0 : i32
    %c0_i32_2 = arith.constant 0 : i32
    %c0_i32_3 = arith.constant 0 : i32
    return %c0_i32, %c0_i32_0, %c0_i32_1, %c0_i32_2 : i32, i32, i32, i32
  }
  func.func @transform_2(%arg0: i32, %arg1: i32) -> (i32, i32) {
    %c0_i32 = arith.constant 0 : i32
    %c0_i32_0 = arith.constant 0 : i32
    %c0_i32_1 = arith.constant 0 : i32
    return %c0_i32, %c0_i32_0 : i32, i32
  }
  func.func @transform_3(%arg0: i32, %arg1: i32) -> (i32, i32, i32, i32) {
    %c0_i32 = arith.constant 0 : i32
    %c0_i32_0 = arith.constant 0 : i32
    %c0_i32_1 = arith.constant 0 : i32
    return %arg0, %arg1, %c0_i32, %c0_i32_0 : i32, i32, i32, i32
  }
}

</mosaic_0001>

<llo_original>
// kernel: tpu_custom_call.1
$region0: #{tpu_custom_call.1}
  #allocation0 [shape = 'u32[]', space=smem, size = 0x4, offset = 0x4, fixed_abs, tag = 'smem constant byte address 0x4 - core index']
  #allocation1 [shape = 'u32[144,128]{1,0:T(1,128)}', space=vmem, size = 0x12000, scoped, tag = 'internal scratch']
  %s0 = inlined_call_operand.vmem [shape: f32[2,18,18,8], index: 0, kind: input, shape index: {}]
  %s1 = inlined_call_operand.vmem [shape: f32[3,3,8,128], index: 1, kind: input, shape index: {}]
  %s2 = inlined_call_operand.vmem [shape: f32[1,128], index: 2, kind: input, shape index: {}]
  %s3 = inlined_call_operand.hbm [shape: f32[2,16,16,128], index: 3, kind: output, shape index: {}]
  %s4 = sld [smem:[#allocation0]]
  $region45: #{tpu_custom_call.1} parent=0
    _
  %s6 = ssub.s32 1, %s4
  %s7 = scalar_select 0, %s6, %s4
  $region1: #{tpu_custom_call.1} parent=0
    #allocation2 [shape = 'u8[131072]{0}', space=vmem, size = 0x20000, scoped, tag = 'output window, operand 0']
    #allocation3 [shape = 's32[2]{0}', space=sflag, size = 0x8, scoped, tag = 'scoped memory for tpu_custom_call.1']
    %8 = vsyncpa [#allocation3], 0
    %s9 = scalar_lea.sflag [#allocation3], 1
    %10 = vsyncpa %s9, 0
    loop: start=0, step=1, limit=6
    $region2: #{tpu_custom_call.1} parent=1 // loop_pre_header
      _
    $region3: #{tpu_custom_call.1} parent=1 // loop_header
      %s12 = sphi 0, %s16
      %p13 = scmp.ge.s32.totalorder %s12, 6
      %s19 = sphi 0, %s31
      %s20 = sphi 0, %s27
      %s21 = sphi 0, %s19
      %s22 = sphi 0, %s20
      %s23 = sphi 0, %s21
      %s24 = sphi 0, %s22
      %s34 = sphi 0, %s36
      %s37 = sphi 0, %s34
      %s38 = sphi 0, %s37
      %s54 = sphi 0, %s38
      %s58 = sphi 0, %s58
      %s60 = sphi 0, %s58
      %s61 = sphi 0, %s60
      %s75 = sphi 0, %s61
      %s79 = sphi 0, %s79
      %s81 = sphi 0, %s79
      %s82 = sphi 0, %s81
      %s96 = sphi 0, %s82
      %s104 = sphi 0, %s106
      %s107 = sphi 0, %s104
      %s108 = sphi 0, %s107
      %s124 = sphi 0, %s108
    $region4: #{tpu_custom_call.1} parent=1 // loop_header_branch
      %15 = sbr.rel (%p13) target = $region8
    $region5: #{tpu_custom_call.1} parent=1 // loop_body
      %s17 = ssub.s32 %s12, 1
      %s18 = ssub.s32 %s12, 2
      %s25 = sadd.s32 1, %s20
      %p26 = scmp.ge.s32.totalorder %s25, 2
      %s27 = scalar_select %p26, 0, %s25
      %s28 = sadd.s32 1, %s19
      %s29 = scalar_select %p26, %s28, %s19
      %p30 = scmp.ge.s32.totalorder %s29, 2
      %s31 = scalar_select %p30, 0, %s29
      %s32 = ssub.s32 %s19, %s31
      %p33 = scmp.eq.s32.totalorder %s32, 0
      %s35 = sadd.s32 %s34, 1
      %s36 = scalar_select %p33, %s34, %s35
      %p39 = pneg %p33
      %p40 = scmp.eq.s32.totalorder %s12, 3
      %p41 = por %p39, %p40
      %p42 = scmp.ne.s32.totalorder %s34, %s37
      %p43 = scmp.eq.s32.totalorder %s12, 0
      %p44 = por %p42, %p43
      %p45 = scmp.ne.s32.totalorder %s34, %s37
      %p46 = scmp.eq.s32.totalorder %s17, 3
      %p47 = por %p45, %p46
      %p48 = scmp.ne.s32.totalorder %s37, %s38
      %p49 = scmp.eq.s32.totalorder %s17, 0
      %p50 = por %p48, %p49
      %p51 = scmp.ne.s32.totalorder %s37, %s38
      %p52 = scmp.eq.s32.totalorder %s18, 3
      %p53 = por %p51, %p52
      %p55 = scmp.ne.s32.totalorder %s38, %s54
      %p56 = scmp.eq.s32.totalorder %s18, 0
      %p57 = por %p55, %p56
      %s59 = sadd.s32 %s58, 1
      %p62 = scmp.eq.s32.totalorder %s12, 3
      %p63 = scmp.ne.s32.totalorder %s58, %s60
      %p64 = scmp.eq.s32.totalorder %s12, 0
      %p65 = por %p63, %p64
      %p66 = scmp.ne.s32.totalorder %s58, %s60
      %p67 = scmp.eq.s32.totalorder %s17, 3
      %p68 = por %p66, %p67
      %p69 = scmp.ne.s32.totalorder %s60, %s61
      %p70 = scmp.eq.s32.totalorder %s17, 0
      %p71 = por %p69, %p70
      %p72 = scmp.ne.s32.totalorder %s60, %s61
      %p73 = scmp.eq.s32.totalorder %s18, 3
      %p74 = por %p72, %p73
      %p76 = scmp.ne.s32.totalorder %s61, %s75
      %p77 = scmp.eq.s32.totalorder %s18, 0
      %p78 = por %p76, %p77
      %s80 = sadd.s32 %s79, 1
      %p83 = scmp.eq.s32.totalorder %s12, 3
      %p84 = scmp.ne.s32.totalorder %s79, %s81
      %p85 = scmp.eq.s32.totalorder %s12, 0
      %p86 = por %p84, %p85
      %p87 = scmp.ne.s32.totalorder %s79, %s81
      %p88 = scmp.eq.s32.totalorder %s17, 3
      %p89 = por %p87, %p88
      %p90 = scmp.ne.s32.totalorder %s81, %s82
      %p91 = scmp.eq.s32.totalorder %s17, 0
      %p92 = por %p90, %p91
      %p93 = scmp.ne.s32.totalorder %s81, %s82
      %p94 = scmp.eq.s32.totalorder %s18, 3
      %p95 = por %p93, %p94
      %p97 = scmp.ne.s32.totalorder %s82, %s96
      %p98 = scmp.eq.s32.totalorder %s18, 0
      %p99 = por %p97, %p98
      %s100 = ssub.s32 %s19, %s31
      %s101 = ssub.s32 %s20, %s27
      %s102 = sor.u32 %s100, %s101
      %p103 = scmp.eq.s32.totalorder %s102, 0
      %s105 = sadd.s32 %s104, 1
      %s106 = scalar_select %p103, %s104, %s105
      %p109 = pneg %p103
      %p110 = scmp.eq.s32.totalorder %s12, 3
      %p111 = por %p109, %p110
      %p112 = scmp.ne.s32.totalorder %s104, %s107
      %p113 = scmp.eq.s32.totalorder %s12, 0
      %p114 = por %p112, %p113
      %p115 = scmp.ne.s32.totalorder %s104, %s107
      %p116 = scmp.eq.s32.totalorder %s17, 3
      %p117 = por %p115, %p116
      %p118 = scmp.ne.s32.totalorder %s107, %s108
      %p119 = scmp.eq.s32.totalorder %s17, 0
      %p120 = por %p118, %p119
      %p121 = scmp.ne.s32.totalorder %s107, %s108
      %p122 = scmp.eq.s32.totalorder %s18, 3
      %p123 = por %p121, %p122
      %p125 = scmp.ne.s32.totalorder %s108, %s124
      %p126 = scmp.eq.s32.totalorder %s18, 0
      %p127 = por %p125, %p126
      %p128 = scmp.le.s32.totalorder 1, %s12
      %p129 = scmp.lt.s32.totalorder %s12, 5
      %p130 = pnand %p128, %p129
      %p131 = pneg %p130
      // Predicated region
      $region9: #{tpu_custom_call.1} parent=5 // pred_check
        _
      $region10: #{tpu_custom_call.1} parent=5 // pred_check_branch
        %133 = sbr.rel (%p130) target = $region12
      $region11: #{tpu_custom_call.1} parent=5 // pred_region
        %s134 = ssub.s32 %s12, 1
        // Predicated region
        $region13: #{tpu_custom_call.1} parent=11 // pred_check
          %p135 = pneg %p71
        $region14: #{tpu_custom_call.1} parent=11 // pred_check_branch
          %137 = sbr.rel (%p135) target = $region16
        $region15: #{tpu_custom_call.1} parent=11 // pred_region
          _
        $region16: #{tpu_custom_call.1} parent=11 // pred_fallthru
          _
        // Predicated region
        $region17: #{tpu_custom_call.1} parent=11 // pred_check
          %p138 = pneg %p92
        $region18: #{tpu_custom_call.1} parent=11 // pred_check_branch
          %140 = sbr.rel (%p138) target = $region20
        $region19: #{tpu_custom_call.1} parent=11 // pred_region
          _
        $region20: #{tpu_custom_call.1} parent=11 // pred_fallthru
          _
      $region12: #{tpu_custom_call.1} parent=5 // pred_fallthru
        _
      %p141 = scmp.lt.s32.totalorder %s12, 4
      // Predicated region
      $region21: #{tpu_custom_call.1} parent=5 // pred_check
        %p142 = pneg %p141
      $region22: #{tpu_custom_call.1} parent=5 // pred_check_branch
        %144 = sbr.rel (%p142) target = $region24
      $region23: #{tpu_custom_call.1} parent=5 // pred_region
        // Predicated region
        $region25: #{tpu_custom_call.1} parent=23 // pred_check
          %p145 = pneg %p44
        $region26: #{tpu_custom_call.1} parent=23 // pred_check_branch
          %147 = sbr.rel (%p145) target = $region28
        $region27: #{tpu_custom_call.1} parent=23 // pred_region
          %p148 = scmp.lt.s32.totalorder %s19, 1
          %s149 = scalar_select %p148, %s19, 1
          %s150 = smul.addr %s149, 54
          %s151 = smul.addr %s150, 8
          %s152 = scalar_lea.vmem %s0, %s151
        $region28: #{tpu_custom_call.1} parent=23 // pred_fallthru
          _
      $region24: #{tpu_custom_call.1} parent=5 // pred_fallthru
        _
      %p153 = scmp.le.s32.totalorder 1, %s12
      %p154 = scmp.lt.s32.totalorder %s12, 5
      %p155 = pnand %p153, %p154
      %p156 = pneg %p155
      // Predicated region
      $region29: #{tpu_custom_call.1} parent=5 // pred_check
        _
      $region30: #{tpu_custom_call.1} parent=5 // pred_check_branch
        %158 = sbr.rel (%p155) target = $region32
      $region31: #{tpu_custom_call.1} parent=5 // pred_region
        %s159 = ssub.s32 %s12, 1
        %p160 = scmp.lt.s32.totalorder %s21, 1
        %s161 = scalar_select %p160, %s21, 1
        %s162 = smul.addr %s161, 54
        %s163 = smul.addr %s162, 8
        %s164 = scalar_lea.vmem %s0, %s163
        %p165 = pneg %p50
        %p166 = pneg %p47
        %p167 = pneg %p71
        %p168 = pneg %p68
        %p169 = pneg %p92
        %p170 = pneg %p89
        %p171 = pneg %p120
        %p172 = pneg %p117
        %s173 = sand.u32 %s107, 1
        %s174 = scalar_lea.sflag [#allocation3], %s173
        %s175 = sand.u32 %s107, 1
        %s176 = smul.addr %s175, 128
        %s177 = scalar_lea.vmem [#allocation2], %s176
        %p178 = scmp.lt.s32.totalorder %s21, 1
        %s179 = scalar_select %p178, %s21, 1
        %s180 = smul.addr %s179, 54
        %s181 = smul.addr %s180, 8
        %s182 = scalar_lea.vmem %s0, %s181
        %s183 = smul.u32 8, %s22
        %s184 = smul.u32 %s22, 8
        %s185 = smul.u32 %s184, 24
        %s186 = scalar_lea.vmem %s182, %s185
        %v187 = vld [vmem:[%s186] sm:$0xff]
        %v188 = vld [vmem:[%s186 + $0x8] sm:$0xff]
        %v189 = vld [vmem:[%s186 + $0x18] sm:$0xff]
        %v190 = vld [vmem:[%s186 + $0x20] sm:$0xff]
        %v191 = vld [vmem:[%s186 + $0x30] sm:$0xff]
        %v192 = vld [vmem:[%s186 + $0x38] sm:$0xff]
        %v193 = vld [vmem:[%s186 + $0x48] sm:$0xff]
        %v194 = vld [vmem:[%s186 + $0x50] sm:$0xff]
        %v195 = vld [vmem:[%s186 + $0x60] sm:$0xff]
        %v196 = vld [vmem:[%s186 + $0x68] sm:$0xff]
        %v197 = vld [vmem:[%s186 + $0x78] sm:$0xff]
        %v198 = vld [vmem:[%s186 + $0x80] sm:$0xff]
        %v199 = vld [vmem:[%s186 + $0x90] sm:$0xff]
        %v200 = vld [vmem:[%s186 + $0x98] sm:$0xff]
        %v201 = vld [vmem:[%s186 + $0xa8] sm:$0xff]
        %v202 = vld [vmem:[%s186 + $0xb0] sm:$0xff]
        %v203 = vld [vmem:[%s1] sm:$0xff]
        %v204 = vld [vmem:[%s186 + $0x1] sm:$0xff]
        %v205 = vld [vmem:[%s186 + $0x9] sm:$0xff]
        %v206 = vld [vmem:[%s186 + $0x19] sm:$0xff]
        %v207 = vld [vmem:[%s186 + $0x21] sm:$0xff]
        %v208 = vld [vmem:[%s186 + $0x31] sm:$0xff]
        %v209 = vld [vmem:[%s186 + $0x39] sm:$0xff]
        %v210 = vld [vmem:[%s186 + $0x49] sm:$0xff]
        %v211 = vld [vmem:[%s186 + $0x51] sm:$0xff]
        %v212 = vld [vmem:[%s186 + $0x61] sm:$0xff]
        %v213 = vld [vmem:[%s186 + $0x69] sm:$0xff]
        %v214 = vld [vmem:[%s186 + $0x79] sm:$0xff]
        %v215 = vld [vmem:[%s186 + $0x81] sm:$0xff]
        %v216 = vld [vmem:[%s186 + $0x91] sm:$0xff]
        %v217 = vld [vmem:[%s186 + $0x99] sm:$0xff]
        %v218 = vld [vmem:[%s186 + $0xa9] sm:$0xff]
        %v219 = vld [vmem:[%s186 + $0xb1] sm:$0xff]
        %s220 = scalar_lea.vmem %s1, 8
        %v221 = vld [vmem:[%s220] sm:$0xff]
        %vm222 = vcmask 64512
        %v224 = vsel %vm222, %v204, 0
        %v227 = vsel %vm222, %v205, 0
        %v230 = vsel %vm222, %v206, 0
        %v233 = vsel %vm222, %v207, 0
        %v236 = vsel %vm222, %v208, 0
        %v239 = vsel %vm222, %v209, 0
        %v242 = vsel %vm222, %v210, 0
        %v245 = vsel %vm222, %v211, 0
        %v248 = vsel %vm222, %v212, 0
        %v251 = vsel %vm222, %v213, 0
        %v254 = vsel %vm222, %v214, 0
        %v257 = vsel %vm222, %v215, 0
        %v260 = vsel %vm222, %v216, 0
        %v263 = vsel %vm222, %v217, 0
        %v266 = vsel %vm222, %v218, 0
        %v269 = vsel %vm222, %v219, 0
        %271 = vmatprep.subr.mxu0 0.0
        %272 = vmatpush1.msra.mxu0 %v221
        %273 = vmatprep.subr.mxu0 0.0
        %274 = vmatpush1.msra.mxu0 0.0
        %275 = vmatprep.subr.mxu0 0.0
        %276 = vmatpush1.msra.mxu0 0.0
        %277 = vmatprep.subr.mxu0 0.0
        %278 = vmatpush1.msra.mxu0 0.0
        %279 = vmatprep.subr.mxu0 0.0
        %280 = vmatpush1.msra.mxu0 0.0
        %281 = vmatprep.subr.mxu0 0.0
        %282 = vmatpush1.msra.mxu0 0.0
        %283 = vmatprep.subr.mxu0 0.0
        %284 = vmatpush1.msra.mxu0 0.0
        %285 = vmatprep.subr.mxu0 0.0
        %286 = vmatpush1.msra.mxu0 0.0
        %287 = vmatprep.subr.mxu0 0.0
        %288 = vmatpush1.msra.mxu0 0.0
        %289 = vmatprep.subr.mxu0 0.0
        %290 = vmatpush1.msra.mxu0 0.0
        %291 = vmatprep.subr.mxu0 0.0
        %292 = vmatpush1.msra.mxu0 0.0
        %293 = vmatprep.subr.mxu0 0.0
        %294 = vmatpush1.msra.mxu0 0.0
        %295 = vmatprep.subr.mxu0 0.0
        %296 = vmatpush1.msra.mxu0 0.0
        %297 = vmatprep.subr.mxu0 0.0
        %298 = vmatpush1.msra.mxu0 0.0
        %299 = vmatprep.subr.mxu0 0.0
        %300 = vmatpush1.msra.mxu0 0.0
        %301 = vmatprep.subr.mxu0 0.0
        %302 = vmatpush1.msra.mxu0 0.0
        %303 = vmatprep.subr.mxu0 0.0
        %304 = vmatpush1.msra.mxu0 0.0
        %305 = vmatprep.subr.mxu0 0.0
        %306 = vmatpush1.msra.mxu0 0.0
        %307 = vmatprep.subr.mxu0 0.0
        %308 = vmatpush1.msra.mxu0 0.0
        %309 = vmatprep.subr.mxu0 0.0
        %310 = vmatpush1.msra.mxu0 0.0
        %311 = vmatprep.subr.mxu0 0.0
        %312 = vmatpush1.msra.mxu0 0.0
        %313 = vmatprep.subr.mxu0 0.0
        %314 = vmatpush1.msra.mxu0 0.0
        %315 = vmatprep.subr.mxu0 0.0
        %316 = vmatpush1.msra.mxu0 0.0
        %317 = vmatprep.subr.mxu0 0.0
        %318 = vmatpush1.msra.mxu0 0.0
        %319 = vmatprep.subr.mxu0 0.0
        %320 = vmatpush1.msra.mxu0 0.0
        %321 = vmatprep.subr.mxu0 0.0
        %322 = vmatpush1.msra.mxu0 0.0
        %323 = vmatprep.subr.mxu0 0.0
        %324 = vmatpush1.msra.mxu0 0.0
        %325 = vmatprep.subr.mxu0 0.0
        %326 = vmatpush1.msra.mxu0 0.0
        %327 = vmatprep.subr.mxu0 0.0
        %328 = vmatpush1.msra.mxu0 0.0
        %329 = vmatprep.subr.mxu0 0.0
        %330 = vmatpush1.msra.mxu0 0.0
        %331 = vmatprep.subr.mxu0 0.0
        %332 = vmatpush1.msra.mxu0 0.0
        %333 = vmatprep.subr.mxu0 0.0
        %334 = vmatpush1.msra.mxu0 0.0
        %335 = vmatprep.mubr.f32.mxu0 0.0
        %336 = vmatmul.mubr.f32.gmra.mrb[0].mxu0 %v224
        %v337 = vpop.f32.mrb[0].mxu0
        %v338 = vadd.f32 0.0, %v337
        %v339 = vpop.f32.mrb[0].mxu0
        %340 = vmatprep.mubr.f32.mxu0 0.0
        %341 = vmatmul.mubr.f32.gmra.mrb[0].mxu0 %v227
        %v342 = vpop.f32.mrb[0].mxu0
        %v343 = vadd.f32 0.0, %v342
        %v344 = vpop.f32.mrb[0].mxu0
        %345 = vmatprep.mubr.f32.mxu0 0.0
        %346 = vmatmul.mubr.f32.gmra.mrb[0].mxu0 %v230
        %v347 = vpop.f32.mrb[0].mxu0
        %v348 = vadd.f32 0.0, %v347
        %v349 = vpop.f32.mrb[0].mxu0
        %350 = vmatprep.mubr.f32.mxu0 0.0
        %351 = vmatmul.mubr.f32.gmra.mrb[0].mxu0 %v233
        %v352 = vpop.f32.mrb[0].mxu0
        %v353 = vadd.f32 0.0, %v352
        %v354 = vpop.f32.mrb[0].mxu0
        %355 = vmatprep.mubr.f32.mxu0 0.0
        %356 = vmatmul.mubr.f32.gmra.mrb[0].mxu0 %v236
        %v357 = vpop.f32.mrb[0].mxu0
        %v358 = vadd.f32 0.0, %v357
        %v359 = vpop.f32.mrb[0].mxu0
        %360 = vmatprep.mubr.f32.mxu0 0.0
        %361 = vmatmul.mubr.f32.gmra.mrb[0].mxu0 %v239
        %v362 = vpop.f32.mrb[0].mxu0
        %v363 = vadd.f32 0.0, %v362
        %v364 = vpop.f32.mrb[0].mxu0
        %365 = vmatprep.mubr.f32.mxu0 0.0
        %366 = vmatmul.mubr.f32.gmra.mrb[0].mxu0 %v242
        %v367 = vpop.f32.mrb[0].mxu0
        %v368 = vadd.f32 0.0, %v367
        %v369 = vpop.f32.mrb[0].mxu0
        %370 = vmatprep.mubr.f32.mxu0 0.0
        %371 = vmatmul.mubr.f32.gmra.mrb[0].mxu0 %v245
        %v372 = vpop.f32.mrb[0].mxu0
        %v373 = vadd.f32 0.0, %v372
        %v374 = vpop.f32.mrb[0].mxu0
        %375 = vmatprep.mubr.f32.mxu0 0.0
        %376 = vmatmul.mubr.f32.gmra.mrb[0].mxu0 %v248
        %v377 = vpop.f32.mrb[0].mxu0
        %v378 = vadd.f32 0.0, %v377
        %v379 = vpop.f32.mrb[0].mxu0
        %380 = vmatprep.mubr.f32.mxu0 0.0
        %381 = vmatmul.mubr.f32.gmra.mrb[0].mxu0 %v251
        %v382 = vpop.f32.mrb[0].mxu0
        %v383 = vadd.f32 0.0, %v382
        %v384 = vpop.f32.mrb[0].mxu0
        %385 = vmatprep.mubr.f32.mxu0 0.0
        %386 = vmatmul.mubr.f32.gmra.mrb[0].mxu0 %v254
        %v387 = vpop.f32.mrb[0].mxu0
        %v388 = vadd.f32 0.0, %v387
        %v389 = vpop.f32.mrb[0].mxu0
        %390 = vmatprep.mubr.f32.mxu0 0.0
        %391 = vmatmul.mubr.f32.gmra.mrb[0].mxu0 %v257
        %v392 = vpop.f32.mrb[0].mxu0
        %v393 = vadd.f32 0.0, %v392
        %v394 = vpop.f32.mrb[0].mxu0
        %395 = vmatprep.mubr.f32.mxu0 0.0
        %396 = vmatmul.mubr.f32.gmra.mrb[0].mxu0 %v260
        %v397 = vpop.f32.mrb[0].mxu0
        %v398 = vadd.f32 0.0, %v397
        %v399 = vpop.f32.mrb[0].mxu0
        %400 = vmatprep.mubr.f32.mxu0 0.0
        %401 = vmatmul.mubr.f32.gmra.mrb[0].mxu0 %v263
        %v402 = vpop.f32.mrb[0].mxu0
        %v403 = vadd.f32 0.0, %v402
        %v404 = vpop.f32.mrb[0].mxu0
        %405 = vmatprep.mubr.f32.mxu0 0.0
        %406 = vmatmul.mubr.f32.gmra.mrb[0].mxu0 %v266
        %v407 = vpop.f32.mrb[0].mxu0
        %v408 = vadd.f32 0.0, %v407
        %v409 = vpop.f32.mrb[0].mxu0
        %410 = vmatprep.mubr.f32.mxu0 0.0
        %411 = vmatmul.mubr.f32.gmra.mrb[0].mxu0 %v269
        %v412 = vpop.f32.mrb[0].mxu0
        %v413 = vadd.f32 0.0, %v412
        %v414 = vpop.f32.mrb[0].mxu0
        %415 = vdwg.mxu0
        %v417 = vsel %vm222, %v187, 0
        %v420 = vsel %vm222, %v188, 0
        %v423 = vsel %vm222, %v189, 0
        %v426 = vsel %vm222, %v190, 0
        %v429 = vsel %vm222, %v191, 0
        %v432 = vsel %vm222, %v192, 0
        %v435 = vsel %vm222, %v193, 0
        %v438 = vsel %vm222, %v194, 0
        %v441 = vsel %vm222, %v195, 0
        %v444 = vsel %vm222, %v196, 0
        %v447 = vsel %vm222, %v197, 0
        %v450 = vsel %vm222, %v198, 0
        %v453 = vsel %vm222, %v199, 0
        %v456 = vsel %vm222, %v200, 0
        %v459 = vsel %vm222, %v201, 0
        %v462 = vsel %vm222, %v202, 0
        %464 = vmatprep.subr.mxu0 0.0
        %465 = vmatpush1.msra.mxu0 %v203
        %466 = vmatprep.subr.mxu0 0.0
        %467 = vmatpush1.msra.mxu0 0.0
        %468 = vmatprep.subr.mxu0 0.0
        %469 = vmatpush1.msra.mxu0 0.0
        %470 = vmatprep.subr.mxu0 0.0
        %471 = vmatpush1.msra.mxu0 0.0
        %472 = vmatprep.subr.mxu0 0.0
        %473 = vmatpush1.msra.mxu0 0.0
        %474 = vmatprep.subr.mxu0 0.0
        %475 = vmatpush1.msra.mxu0 0.0
        %476 = vmatprep.subr.mxu0 0.0
        %477 = vmatpush1.msra.mxu0 0.0
        %478 = vmatprep.subr.mxu0 0.0
        %479 = vmatpush1.msra.mxu0 0.0
        %480 = vmatprep.subr.mxu0 0.0
        %481 = vmatpush1.msra.mxu0 0.0
        %482 = vmatprep.subr.mxu0 0.0
        %483 = vmatpush1.msra.mxu0 0.0
        %484 = vmatprep.subr.mxu0 0.0
        %485 = vmatpush1.msra.mxu0 0.0
        %486 = vmatprep.subr.mxu0 0.0
        %487 = vmatpush1.msra.mxu0 0.0
        %488 = vmatprep.subr.mxu0 0.0
        %489 = vmatpush1.msra.mxu0 0.0
        %490 = vmatprep.subr.mxu0 0.0
        %491 = vmatpush1.msra.mxu0 0.0
        %492 = vmatprep.subr.mxu0 0.0
        %493 = vmatpush1.msra.mxu0 0.0
        %494 = vmatprep.subr.mxu0 0.0
        %495 = vmatpush1.msra.mxu0 0.0
        %496 = vmatprep.subr.mxu0 0.0
        %497 = vmatpush1.msra.mxu0 0.0
        %498 = vmatprep.subr.mxu0 0.0
        %499 = vmatpush1.msra.mxu0 0.0
        %500 = vmatprep.subr.mxu0 0.0
        %501 = vmatpush1.msra.mxu0 0.0
        %502 = vmatprep.subr.mxu0 0.0
        %503 = vmatpush1.msra.mxu0 0.0
        %504 = vmatprep.subr.mxu0 0.0
        %505 = vmatpush1.msra.mxu0 0.0
        %506 = vmatprep.subr.mxu0 0.0
        %507 = vmatpush1.msra.mxu0 0.0
        %508 = vmatprep.subr.mxu0 0.0
        %509 = vmatpush1.msra.mxu0 0.0
        %510 = vmatprep.subr.mxu0 0.0
        %511 = vmatpush1.msra.mxu0 0.0
        %512 = vmatprep.subr.mxu0 0.0
        %513 = vmatpush1.msra.mxu0 0.0
        %514 = vmatprep.subr.mxu0 0.0
        %515 = vmatpush1.msra.mxu0 0.0
        %516 = vmatprep.subr.mxu0 0.0
        %517 = vmatpush1.msra.mxu0 0.0
        %518 = vmatprep.subr.mxu0 0.0
        %519 = vmatpush1.msra.mxu0 0.0
        %520 = vmatprep.subr.mxu0 0.0
        %521 = vmatpush1.msra.mxu0 0.0
        %522 = vmatprep.subr.mxu0 0.0
        %523 = vmatpush1.msra.mxu0 0.0
        %524 = vmatprep.subr.mxu0 0.0
        %525 = vmatpush1.msra.mxu0 0.0
        %526 = vmatprep.subr.mxu0 0.0
        %527 = vmatpush1.msra.mxu0 0.0
        %528 = vmatprep.mubr.f32.mxu0 0.0
        %529 = vmatmul.mubr.f32.gmra.mrb[0].mxu0 %v417
        %v530 = vpop.f32.mrb[0].mxu0
        %v531 = vadd.f32 %v338, %v530
        %v532 = vpop.f32.mrb[0].mxu0
        %533 = vmatprep.mubr.f32.mxu0 0.0
        %534 = vmatmul.mubr.f32.gmra.mrb[0].mxu0 %v420
        %v535 = vpop.f32.mrb[0].mxu0
        %v536 = vadd.f32 %v343, %v535
        %v537 = vpop.f32.mrb[0].mxu0
        %538 = vmatprep.mubr.f32.mxu0 0.0
        %539 = vmatmul.mubr.f32.gmra.mrb[0].mxu0 %v423
        %v540 = vpop.f32.mrb[0].mxu0
        %v541 = vadd.f32 %v348, %v540
        %v542 = vpop.f32.mrb[0].mxu0
        %543 = vmatprep.mubr.f32.mxu0 0.0
        %544 = vmatmul.mubr.f32.gmra.mrb[0].mxu0 %v426
        %v545 = vpop.f32.mrb[0].mxu0
        %v546 = vadd.f32 %v353, %v545
        %v547 = vpop.f32.mrb[0].mxu0
        %548 = vmatprep.mubr.f32.mxu0 0.0
        %549 = vmatmul.mubr.f32.gmra.mrb[0].mxu0 %v429
        %v550 = vpop.f32.mrb[0].mxu0
        %v551 = vadd.f32 %v358, %v550
        %v552 = vpop.f32.mrb[0].mxu0
        %553 = vmatprep.mubr.f32.mxu0 0.0
        %554 = vmatmul.mubr.f32.gmra.mrb[0].mxu0 %v432
        %v555 = vpop.f32.mrb[0].mxu0
        %v556 = vadd.f32 %v363, %v555
        %v557 = vpop.f32.mrb[0].mxu0
        %558 = vmatprep.mubr.f32.mxu0 0.0
        %559 = vmatmul.mubr.f32.gmra.mrb[0].mxu0 %v435
        %v560 = vpop.f32.mrb[0].mxu0
        %v561 = vadd.f32 %v368, %v560
        %v562 = vpop.f32.mrb[0].mxu0
        %563 = vmatprep.mubr.f32.mxu0 0.0
        %564 = vmatmul.mubr.f32.gmra.mrb[0].mxu0 %v438
        %v565 = vpop.f32.mrb[0].mxu0
        %v566 = vadd.f32 %v373, %v565
        %v567 = vpop.f32.mrb[0].mxu0
        %568 = vmatprep.mubr.f32.mxu0 0.0
        %569 = vmatmul.mubr.f32.gmra.mrb[0].mxu0 %v441
        %v570 = vpop.f32.mrb[0].mxu0
        %v571 = vadd.f32 %v378, %v570
        %v572 = vpop.f32.mrb[0].mxu0
        %573 = vmatprep.mubr.f32.mxu0 0.0
        %574 = vmatmul.mubr.f32.gmra.mrb[0].mxu0 %v444
        %v575 = vpop.f32.mrb[0].mxu0
        %v576 = vadd.f32 %v383, %v575
        %v577 = vpop.f32.mrb[0].mxu0
        %578 = vmatprep.mubr.f32.mxu0 0.0
        %579 = vmatmul.mubr.f32.gmra.mrb[0].mxu0 %v447
        %v580 = vpop.f32.mrb[0].mxu0
        %v581 = vadd.f32 %v388, %v580
        %v582 = vpop.f32.mrb[0].mxu0
        %583 = vmatprep.mubr.f32.mxu0 0.0
        %584 = vmatmul.mubr.f32.gmra.mrb[0].mxu0 %v450
        %v585 = vpop.f32.mrb[0].mxu0
        %v586 = vadd.f32 %v393, %v585
        %v587 = vpop.f32.mrb[0].mxu0
        %588 = vmatprep.mubr.f32.mxu0 0.0
        %589 = vmatmul.mubr.f32.gmra.mrb[0].mxu0 %v453
        %v590 = vpop.f32.mrb[0].mxu0
        %v591 = vadd.f32 %v398, %v590
        %v592 = vpop.f32.mrb[0].mxu0
        %593 = vmatprep.mubr.f32.mxu0 0.0
        %594 = vmatmul.mubr.f32.gmra.mrb[0].mxu0 %v456
        %v595 = vpop.f32.mrb[0].mxu0
        %v596 = vadd.f32 %v403, %v595
        %v597 = vpop.f32.mrb[0].mxu0
        %598 = vmatprep.mubr.f32.mxu0 0.0
        %599 = vmatmul.mubr.f32.gmra.mrb[0].mxu0 %v459
        %v600 = vpop.f32.mrb[0].mxu0
        %v601 = vadd.f32 %v408, %v600
        %v602 = vpop.f32.mrb[0].mxu0
        %603 = vmatprep.mubr.f32.mxu0 0.0
        %604 = vmatmul.mubr.f32.gmra.mrb[0].mxu0 %v462
        %v605 = vpop.f32.mrb[0].mxu0
        %v606 = vadd.f32 %v413, %v605
        %v607 = vpop.f32.mrb[0].mxu0
        %608 = vdwg.mxu0
        %v609 = vld [vmem:[%s186 + $0x2] sm:$0xff]
        %v610 = vld [vmem:[%s186 + $0xa] sm:$0xff]
        %v611 = vld [vmem:[%s186 + $0x1a] sm:$0xff]
        %v612 = vld [vmem:[%s186 + $0x22] sm:$0xff]
        %v613 = vld [vmem:[%s186 + $0x32] sm:$0xff]
        %v614 = vld [vmem:[%s186 + $0x3a] sm:$0xff]
        %v615 = vld [vmem:[%s186 + $0x4a] sm:$0xff]
        %v616 = vld [vmem:[%s186 + $0x52] sm:$0xff]
        %v617 = vld [vmem:[%s186 + $0x62] sm:$0xff]
        %v618 = vld [vmem:[%s186 + $0x6a] sm:$0xff]
        %v619 = vld [vmem:[%s186 + $0x7a] sm:$0xff]
        %v620 = vld [vmem:[%s186 + $0x82] sm:$0xff]
        %v621 = vld [vmem:[%s186 + $0x92] sm:$0xff]
        %v622 = vld [vmem:[%s186 + $0x9a] sm:$0xff]
        %v623 = vld [vmem:[%s186 + $0xaa] sm:$0xff]
        %v624 = vld [vmem:[%s186 + $0xb2] sm:$0xff]
        %s625 = scalar_lea.vmem %s1, 16
        %v626 = vld [vmem:[%s625] sm:$0xff]
        %v628 = vsel %vm222, %v609, 0
        %v631 = vsel %vm222, %v610, 0
        %v634 = vsel %vm222, %v611, 0
        %v637 = vsel %vm222, %v612, 0
        %v640 = vsel %vm222, %v613, 0
        %v643 = vsel %vm222, %v614, 0
        %v646 = vsel %vm222, %v615, 0
        %v649 = vsel %vm222, %v616, 0
        %v652 = vsel %vm222, %v617, 0
        %v655 = vsel %vm222, %v618, 0
        %v658 = vsel %vm222, %v619, 0
        %v661 = vsel %vm222, %v620, 0
        %v664 = vsel %vm222, %v621, 0
        %v667 = vsel %vm222, %v622, 0
        %v670 = vsel %vm222, %v623, 0
        %v673 = vsel %vm222, %v624, 0
        %675 = vmatprep.subr.mxu0 0.0
        %676 = vmatpush1.msra.mxu0 %v626
        %677 = vmatprep.subr.mxu0 0.0
        %678 = vmatpush1.msra.mxu0 0.0
        %679 = vmatprep.subr.mxu0 0.0
        %680 = vmatpush1.msra.mxu0 0.0
        %681 = vmatprep.subr.mxu0 0.0
        %682 = vmatpush1.msra.mxu0 0.0
        %683 = vmatprep.subr.mxu0 0.0
        %684 = vmatpush1.msra.mxu0 0.0
        %685 = vmatprep.subr.mxu0 0.0
        %686 = vmatpush1.msra.mxu0 0.0
        %687 = vmatprep.subr.mxu0 0.0
        %688 = vmatpush1.msra.mxu0 0.0
        %689 = vmatprep.subr.mxu0 0.0
        %690 = vmatpush1.msra.mxu0 0.0
        %691 = vmatprep.subr.mxu0 0.0
        %692 = vmatpush1.msra.mxu0 0.0
        %693 = vmatprep.subr.mxu0 0.0
        %694 = vmatpush1.msra.mxu0 0.0
        %695 = vmatprep.subr.mxu0 0.0
        %696 = vmatpush1.msra.mxu0 0.0
        %697 = vmatprep.subr.mxu0 0.0
        %698 = vmatpush1.msra.mxu0 0.0
        %699 = vmatprep.subr.mxu0 0.0
        %700 = vmatpush1.msra.mxu0 0.0
        %701 = vmatprep.subr.mxu0 0.0
        %702 = vmatpush1.msra.mxu0 0.0
        %703 = vmatprep.subr.mxu0 0.0
        %704 = vmatpush1.msra.mxu0 0.0
        %705 = vmatprep.subr.mxu0 0.0
        %706 = vmatpush1.msra.mxu0 0.0
        %707 = vmatprep.subr.mxu0 0.0
        %708 = vmatpush1.msra.mxu0 0.0
        %709 = vmatprep.subr.mxu0 0.0
        %710 = vmatpush1.msra.mxu0 0.0
        %711 = vmatprep.subr.mxu0 0.0
        %712 = vmatpush1.msra.mxu0 0.0
        %713 = vmatprep.subr.mxu0 0.0
        %714 = vmatpush1.msra.mxu0 0.0
        %715 = vmatprep.subr.mxu0 0.0
        %716 = vmatpush1.msra.mxu0 0.0
        %717 = vmatprep.subr.mxu0 0.0
        %718 = vmatpush1.msra.mxu0 0.0
        %719 = vmatprep.subr.mxu0 0.0
        %720 = vmatpush1.msra.mxu0 0.0
        %721 = vmatprep.subr.mxu0 0.0
        %722 = vmatpush1.msra.mxu0 0.0
        %723 = vmatprep.subr.mxu0 0.0
        %724 = vmatpush1.msra.mxu0 0.0
        %725 = vmatprep.subr.mxu0 0.0
        %726 = vmatpush1.msra.mxu0 0.0
        %727 = vmatprep.subr.mxu0 0.0
        %728 = vmatpush1.msra.mxu0 0.0
        %729 = vmatprep.subr.mxu0 0.0
        %730 = vmatpush1.msra.mxu0 0.0
        %731 = vmatprep.subr.mxu0 0.0
        %732 = vmatpush1.msra.mxu0 0.0
        %733 = vmatprep.subr.mxu0 0.0
        %734 = vmatpush1.msra.mxu0 0.0
        %735 = vmatprep.subr.mxu0 0.0
        %736 = vmatpush1.msra.mxu0 0.0
        %737 = vmatprep.subr.mxu0 0.0
        %738 = vmatpush1.msra.mxu0 0.0
        %739 = vmatprep.mubr.f32.mxu0 0.0
        %740 = vmatmul.mubr.f32.gmra.mrb[0].mxu0 %v628
        %v741 = vpop.f32.mrb[0].mxu0
        %v742 = vadd.f32 0.0, %v741
        %v743 = vpop.f32.mrb[0].mxu0
        %744 = vmatprep.mubr.f32.mxu0 0.0
        %745 = vmatmul.mubr.f32.gmra.mrb[0].mxu0 %v631
        %v746 = vpop.f32.mrb[0].mxu0
        %v747 = vadd.f32 0.0, %v746
        %v748 = vpop.f32.mrb[0].mxu0
        %749 = vmatprep.mubr.f32.mxu0 0.0
        %750 = vmatmul.mubr.f32.gmra.mrb[0].mxu0 %v634
        %v751 = vpop.f32.mrb[0].mxu0
        %v752 = vadd.f32 0.0, %v751
        %v753 = vpop.f32.mrb[0].mxu0
        %754 = vmatprep.mubr.f32.mxu0 0.0
        %755 = vmatmul.mubr.f32.gmra.mrb[0].mxu0 %v637
        %v756 = vpop.f32.mrb[0].mxu0
        %v757 = vadd.f32 0.0, %v756
        %v758 = vpop.f32.mrb[0].mxu0
        %759 = vmatprep.mubr.f32.mxu0 0.0
        %760 = vmatmul.mubr.f32.gmra.mrb[0].mxu0 %v640
        %v761 = vpop.f32.mrb[0].mxu0
        %v762 = vadd.f32 0.0, %v761
        %v763 = vpop.f32.mrb[0].mxu0
        %764 = vmatprep.mubr.f32.mxu0 0.0
        %765 = vmatmul.mubr.f32.gmra.mrb[0].mxu0 %v643
        %v766 = vpop.f32.mrb[0].mxu0
        %v767 = vadd.f32 0.0, %v766
        %v768 = vpop.f32.mrb[0].mxu0
        %769 = vmatprep.mubr.f32.mxu0 0.0
        %770 = vmatmul.mubr.f32.gmra.mrb[0].mxu0 %v646
        %v771 = vpop.f32.mrb[0].mxu0
        %v772 = vadd.f32 0.0, %v771
        %v773 = vpop.f32.mrb[0].mxu0
        %774 = vmatprep.mubr.f32.mxu0 0.0
        %775 = vmatmul.mubr.f32.gmra.mrb[0].mxu0 %v649
        %v776 = vpop.f32.mrb[0].mxu0
        %v777 = vadd.f32 0.0, %v776
        %v778 = vpop.f32.mrb[0].mxu0
        %779 = vmatprep.mubr.f32.mxu0 0.0
        %780 = vmatmul.mubr.f32.gmra.mrb[0].mxu0 %v652
        %v781 = vpop.f32.mrb[0].mxu0
        %v782 = vadd.f32 0.0, %v781
        %v783 = vpop.f32.mrb[0].mxu0
        %784 = vmatprep.mubr.f32.mxu0 0.0
        %785 = vmatmul.mubr.f32.gmra.mrb[0].mxu0 %v655
        %v786 = vpop.f32.mrb[0].mxu0
        %v787 = vadd.f32 0.0, %v786
        %v788 = vpop.f32.mrb[0].mxu0
        %789 = vmatprep.mubr.f32.mxu0 0.0
        %790 = vmatmul.mubr.f32.gmra.mrb[0].mxu0 %v658
        %v791 = vpop.f32.mrb[0].mxu0
        %v792 = vadd.f32 0.0, %v791
        %v793 = vpop.f32.mrb[0].mxu0
        %794 = vmatprep.mubr.f32.mxu0 0.0
        %795 = vmatmul.mubr.f32.gmra.mrb[0].mxu0 %v661
        %v796 = vpop.f32.mrb[0].mxu0
        %v797 = vadd.f32 0.0, %v796
        %v798 = vpop.f32.mrb[0].mxu0
        %799 = vmatprep.mubr.f32.mxu0 0.0
        %800 = vmatmul.mubr.f32.gmra.mrb[0].mxu0 %v664
        %v801 = vpop.f32.mrb[0].mxu0
        %v802 = vadd.f32 0.0, %v801
        %v803 = vpop.f32.mrb[0].mxu0
        %804 = vmatprep.mubr.f32.mxu0 0.0
        %805 = vmatmul.mubr.f32.gmra.mrb[0].mxu0 %v667
        %v806 = vpop.f32.mrb[0].mxu0
        %v807 = vadd.f32 0.0, %v806
        %v808 = vpop.f32.mrb[0].mxu0
        %809 = vmatprep.mubr.f32.mxu0 0.0
        %810 = vmatmul.mubr.f32.gmra.mrb[0].mxu0 %v670
        %v811 = vpop.f32.mrb[0].mxu0
        %v812 = vadd.f32 0.0, %v811
        %v813 = vpop.f32.mrb[0].mxu0
        %814 = vmatprep.mubr.f32.mxu0 0.0
        %815 = vmatmul.mubr.f32.gmra.mrb[0].mxu0 %v673
        %v816 = vpop.f32.mrb[0].mxu0
        %v817 = vadd.f32 0.0, %v816
        %v818 = vpop.f32.mrb[0].mxu0
        %819 = vdwg.mxu0
        %v820 = vadd.f32 %v531, %v742
        %v821 = vadd.f32 %v536, %v747
        %v822 = vadd.f32 %v541, %v752
        %v823 = vadd.f32 %v546, %v757
        %v824 = vadd.f32 %v551, %v762
        %v825 = vadd.f32 %v556, %v767
        %v826 = vadd.f32 %v561, %v772
        %v827 = vadd.f32 %v566, %v777
        %v828 = vadd.f32 %v571, %v782
        %v829 = vadd.f32 %v576, %v787
        %v830 = vadd.f32 %v581, %v792
        %v831 = vadd.f32 %v586, %v797
        %v832 = vadd.f32 %v591, %v802
        %v833 = vadd.f32 %v596, %v807
        %v834 = vadd.f32 %v601, %v812
        %v835 = vadd.f32 %v606, %v817
        %s836 = sadd.s32 %s184, 1
        %s837 = smul.u32 %s836, 24
        %s838 = scalar_lea.vmem %s182, %s837
        %v839 = vld [vmem:[%s838] sm:$0xff]
        %v840 = vld [vmem:[%s838 + $0x8] sm:$0xff]
        %v841 = vld [vmem:[%s838 + $0x18] sm:$0xff]
        %v842 = vld [vmem:[%s838 + $0x20] sm:$0xff]
        %v843 = vld [vmem:[%s838 + $0x30] sm:$0xff]
        %v844 = vld [vmem:[%s838 + $0x38] sm:$0xff]
        %v845 = vld [vmem:[%s838 + $0x48] sm:$0xff]
        %v846 = vld [vmem:[%s838 + $0x50] sm:$0xff]
        %v847 = vld [vmem:[%s838 + $0x60] sm:$0xff]
        %v848 = vld [vmem:[%s838 + $0x68] sm:$0xff]
        %v849 = vld [vmem:[%s838 + $0x78] sm:$0xff]
        %v850 = vld [vmem:[%s838 + $0x80] sm:$0xff]
        %v851 = vld [vmem:[%s838 + $0x90] sm:$0xff]
        %v852 = vld [vmem:[%s838 + $0x98] sm:$0xff]
        %v853 = vld [vmem:[%s838 + $0xa8] sm:$0xff]
        %v854 = vld [vmem:[%s838 + $0xb0] sm:$0xff]
        %s855 = scalar_lea.vmem %s1, 24
        %v856 = vld [vmem:[%s855] sm:$0xff]
        %v858 = vsel %vm222, %v839, 0
        %v861 = vsel %vm222, %v840, 0
        %v864 = vsel %vm222, %v841, 0
        %v867 = vsel %vm222, %v842, 0
        %v870 = vsel %vm222, %v843, 0
        %v873 = vsel %vm222, %v844, 0
        %v876 = vsel %vm222, %v845, 0
        %v879 = vsel %vm222, %v846, 0
        %v882 = vsel %vm222, %v847, 0
        %v885 = vsel %vm222, %v848, 0
        %v888 = vsel %vm222, %v849, 0
        %v891 = vsel %vm222, %v850, 0
        %v894 = vsel %vm222, %v851, 0
        %v897 = vsel %vm222, %v852, 0
        %v900 = vsel %vm222, %v853, 0
        %v903 = vsel %vm222, %v854, 0
        %905 = vmatprep.subr.mxu0 0.0
        %906 = vmatpush1.msra.mxu0 %v856
        %907 = vmatprep.subr.mxu0 0.0
        %908 = vmatpush1.msra.mxu0 0.0
        %909 = vmatprep.subr.mxu0 0.0
        %910 = vmatpush1.msra.mxu0 0.0
        %911 = vmatprep.subr.mxu0 0.0
        %912 = vmatpush1.msra.mxu0 0.0
        %913 = vmatprep.subr.mxu0 0.0
        %914 = vmatpush1.msra.mxu0 0.0
        %915 = vmatprep.subr.mxu0 0.0
        %916 = vmatpush1.msra.mxu0 0.0
        %917 = vmatprep.subr.mxu0 0.0
        %918 = vmatpush1.msra.mxu0 0.0
        %919 = vmatprep.subr.mxu0 0.0
        %920 = vmatpush1.msra.mxu0 0.0
        %921 = vmatprep.subr.mxu0 0.0
        %922 = vmatpush1.msra.mxu0 0.0
        %923 = vmatprep.subr.mxu0 0.0
        %924 = vmatpush1.msra.mxu0 0.0
        %925 = vmatprep.subr.mxu0 0.0
        %926 = vmatpush1.msra.mxu0 0.0
        %927 = vmatprep.subr.mxu0 0.0
        %928 = vmatpush1.msra.mxu0 0.0
        %929 = vmatprep.subr.mxu0 0.0
        %930 = vmatpush1.msra.mxu0 0.0
        %931 = vmatprep.subr.mxu0 0.0
        %932 = vmatpush1.msra.mxu0 0.0
        %933 = vmatprep.subr.mxu0 0.0
        %934 = vmatpush1.msra.mxu0 0.0
        %935 = vmatprep.subr.mxu0 0.0
        %936 = vmatpush1.msra.mxu0 0.0
        %937 = vmatprep.subr.mxu0 0.0
        %938 = vmatpush1.msra.mxu0 0.0
        %939 = vmatprep.subr.mxu0 0.0
        %940 = vmatpush1.msra.mxu0 0.0
        %941 = vmatprep.subr.mxu0 0.0
        %942 = vmatpush1.msra.mxu0 0.0
        %943 = vmatprep.subr.mxu0 0.0
        %944 = vmatpush1.msra.mxu0 0.0
        %945 = vmatprep.subr.mxu0 0.0
        %946 = vmatpush1.msra.mxu0 0.0
        %947 = vmatprep.subr.mxu0 0.0
        %948 = vmatpush1.msra.mxu0 0.0
        %949 = vmatprep.subr.mxu0 0.0
        %950 = vmatpush1.msra.mxu0 0.0
        %951 = vmatprep.subr.mxu0 0.0
        %952 = vmatpush1.msra.mxu0 0.0
        %953 = vmatprep.subr.mxu0 0.0
        %954 = vmatpush1.msra.mxu0 0.0
        %955 = vmatprep.subr.mxu0 0.0
        %956 = vmatpush1.msra.mxu0 0.0
        %957 = vmatprep.subr.mxu0 0.0
        %958 = vmatpush1.msra.mxu0 0.0
        %959 = vmatprep.subr.mxu0 0.0
        %960 = vmatpush1.msra.mxu0 0.0
        %961 = vmatprep.subr.mxu0 0.0
        %962 = vmatpush1.msra.mxu0 0.0
        %963 = vmatprep.subr.mxu0 0.0
        %964 = vmatpush1.msra.mxu0 0.0
        %965 = vmatprep.subr.mxu0 0.0
        %966 = vmatpush1.msra.mxu0 0.0
        %967 = vmatprep.subr.mxu0 0.0
        %968 = vmatpush1.msra.mxu0 0.0
        %969 = vmatprep.mubr.f32.mxu0 0.0
        %970 = vmatmul.mubr.f32.gmra.mrb[0].mxu0 %v858
        %v971 = vpop.f32.mrb[0].mxu0
        %v972 = vadd.f32 0.0, %v971
        %v973 = vpop.f32.mrb[0].mxu0
        %974 = vmatprep.mubr.f32.mxu0 0.0
        %975 = vmatmul.mubr.f32.gmra.mrb[0].mxu0 %v861
        %v976 = vpop.f32.mrb[0].mxu0
        %v977 = vadd.f32 0.0, %v976
        %v978 = vpop.f32.mrb[0].mxu0
        %979 = vmatprep.mubr.f32.mxu0 0.0
        %980 = vmatmul.mubr.f32.gmra.mrb[0].mxu0 %v864
        %v981 = vpop.f32.mrb[0].mxu0
        %v982 = vadd.f32 0.0, %v981
        %v983 = vpop.f32.mrb[0].mxu0
        %984 = vmatprep.mubr.f32.mxu0 0.0
        %985 = vmatmul.mubr.f32.gmra.mrb[0].mxu0 %v867
        %v986 = vpop.f32.mrb[0].mxu0
        %v987 = vadd.f32 0.0, %v986
        %v988 = vpop.f32.mrb[0].mxu0
        %989 = vmatprep.mubr.f32.mxu0 0.0
        %990 = vmatmul.mubr.f32.gmra.mrb[0].mxu0 %v870
        %v991 = vpop.f32.mrb[0].mxu0
        %v992 = vadd.f32 0.0, %v991
        %v993 = vpop.f32.mrb[0].mxu0
        %994 = vmatprep.mubr.f32.mxu0 0.0
        %995 = vmatmul.mubr.f32.gmra.mrb[0].mxu0 %v873
        %v996 = vpop.f32.mrb[0].mxu0
        %v997 = vadd.f32 0.0, %v996
        %v998 = vpop.f32.mrb[0].mxu0
        %999 = vmatprep.mubr.f32.mxu0 0.0
        %1000 = vmatmul.mubr.f32.gmra.mrb[0].mxu0 %v876
        %v1001 = vpop.f32.mrb[0].mxu0
        %v1002 = vadd.f32 0.0, %v1001
        %v1003 = vpop.f32.mrb[0].mxu0
        %1004 = vmatprep.mubr.f32.mxu0 0.0
        %1005 = vmatmul.mubr.f32.gmra.mrb[0].mxu0 %v879
        %v1006 = vpop.f32.mrb[0].mxu0
        %v1007 = vadd.f32 0.0, %v1006
        %v1008 = vpop.f32.mrb[0].mxu0
        %1009 = vmatprep.mubr.f32.mxu0 0.0
        %1010 = vmatmul.mubr.f32.gmra.mrb[0].mxu0 %v882
        %v1011 = vpop.f32.mrb[0].mxu0
        %v1012 = vadd.f32 0.0, %v1011
        %v1013 = vpop.f32.mrb[0].mxu0
        %1014 = vmatprep.mubr.f32.mxu0 0.0
        %1015 = vmatmul.mubr.f32.gmra.mrb[0].mxu0 %v885
        %v1016 = vpop.f32.mrb[0].mxu0
        %v1017 = vadd.f32 0.0, %v1016
        %v1018 = vpop.f32.mrb[0].mxu0
        %1019 = vmatprep.mubr.f32.mxu0 0.0
        %1020 = vmatmul.mubr.f32.gmra.mrb[0].mxu0 %v888
        %v1021 = vpop.f32.mrb[0].mxu0
        %v1022 = vadd.f32 0.0, %v1021
        %v1023 = vpop.f32.mrb[0].mxu0
        %1024 = vmatprep.mubr.f32.mxu0 0.0
        %1025 = vmatmul.mubr.f32.gmra.mrb[0].mxu0 %v891
        %v1026 = vpop.f32.mrb[0].mxu0
        %v1027 = vadd.f32 0.0, %v1026
        %v1028 = vpop.f32.mrb[0].mxu0
        %1029 = vmatprep.mubr.f32.mxu0 0.0
        %1030 = vmatmul.mubr.f32.gmra.mrb[0].mxu0 %v894
        %v1031 = vpop.f32.mrb[0].mxu0
        %v1032 = vadd.f32 0.0, %v1031
        %v1033 = vpop.f32.mrb[0].mxu0
        %1034 = vmatprep.mubr.f32.mxu0 0.0
        %1035 = vmatmul.mubr.f32.gmra.mrb[0].mxu0 %v897
        %v1036 = vpop.f32.mrb[0].mxu0
        %v1037 = vadd.f32 0.0, %v1036
        %v1038 = vpop.f32.mrb[0].mxu0
        %1039 = vmatprep.mubr.f32.mxu0 0.0
        %1040 = vmatmul.mubr.f32.gmra.mrb[0].mxu0 %v900
        %v1041 = vpop.f32.mrb[0].mxu0
        %v1042 = vadd.f32 0.0, %v1041
        %v1043 = vpop.f32.mrb[0].mxu0
        %1044 = vmatprep.mubr.f32.mxu0 0.0
        %1045 = vmatmul.mubr.f32.gmra.mrb[0].mxu0 %v903
        %v1046 = vpop.f32.mrb[0].mxu0
        %v1047 = vadd.f32 0.0, %v1046
        %v1048 = vpop.f32.mrb[0].mxu0
        %1049 = vdwg.mxu0
        %v1050 = vadd.f32 %v820, %v972
        %v1051 = vadd.f32 %v821, %v977
        %v1052 = vadd.f32 %v822, %v982
        %v1053 = vadd.f32 %v823, %v987
        %v1054 = vadd.f32 %v824, %v992
        %v1055 = vadd.f32 %v825, %v997
        %v1056 = vadd.f32 %v826, %v1002
        %v1057 = vadd.f32 %v827, %v1007
        %v1058 = vadd.f32 %v828, %v1012
        %v1059 = vadd.f32 %v829, %v1017
        %v1060 = vadd.f32 %v830, %v1022
        %v1061 = vadd.f32 %v831, %v1027
        %v1062 = vadd.f32 %v832, %v1032
        %v1063 = vadd.f32 %v833, %v1037
        %v1064 = vadd.f32 %v834, %v1042
        %v1065 = vadd.f32 %v835, %v1047
        %v1066 = vld [vmem:[%s838 + $0x1] sm:$0xff]
        %v1067 = vld [vmem:[%s838 + $0x9] sm:$0xff]
        %v1068 = vld [vmem:[%s838 + $0x19] sm:$0xff]
        %v1069 = vld [vmem:[%s838 + $0x21] sm:$0xff]
        %v1070 = vld [vmem:[%s838 + $0x31] sm:$0xff]
        %v1071 = vld [vmem:[%s838 + $0x39] sm:$0xff]
        %v1072 = vld [vmem:[%s838 + $0x49] sm:$0xff]
        %v1073 = vld [vmem:[%s838 + $0x51] sm:$0xff]
        %v1074 = vld [vmem:[%s838 + $0x61] sm:$0xff]
        %v1075 = vld [vmem:[%s838 + $0x69] sm:$0xff]
        %v1076 = vld [vmem:[%s838 + $0x79] sm:$0xff]
        %v1077 = vld [vmem:[%s838 + $0x81] sm:$0xff]
        %v1078 = vld [vmem:[%s838 + $0x91] sm:$0xff]
        %v1079 = vld [vmem:[%s838 + $0x99] sm:$0xff]
        %v1080 = vld [vmem:[%s838 + $0xa9] sm:$0xff]
        %v1081 = vld [vmem:[%s838 + $0xb1] sm:$0xff]
        %s1082 = scalar_lea.vmem %s1, 32
        %v1083 = vld [vmem:[%s1082] sm:$0xff]
        %v1085 = vsel %vm222, %v1066, 0
        %v1088 = vsel %vm222, %v1067, 0
        %v1091 = vsel %vm222, %v1068, 0
        %v1094 = vsel %vm222, %v1069, 0
        %v1097 = vsel %vm222, %v1070, 0
        %v1100 = vsel %vm222, %v1071, 0
        %v1103 = vsel %vm222, %v1072, 0
        %v1106 = vsel %vm222, %v1073, 0
        %v1109 = vsel %vm222, %v1074, 0
        %v1112 = vsel %vm222, %v1075, 0
        %v1115 = vsel %vm222, %v1076, 0
        %v1118 = vsel %vm222, %v1077, 0
        %v1121 = vsel %vm222, %v1078, 0
        %v1124 = vsel %vm222, %v1079, 0
        %v1127 = vsel %vm222, %v1080, 0
        %v1130 = vsel %vm222, %v1081, 0
        %1132 = vmatprep.subr.mxu0 0.0
        %1133 = vmatpush1.msra.mxu0 %v1083
        %1134 = vmatprep.subr.mxu0 0.0
        %1135 = vmatpush1.msra.mxu0 0.0
        %1136 = vmatprep.subr.mxu0 0.0
        %1137 = vmatpush1.msra.mxu0 0.0
        %1138 = vmatprep.subr.mxu0 0.0
        %1139 = vmatpush1.msra.mxu0 0.0
        %1140 = vmatprep.subr.mxu0 0.0
        %1141 = vmatpush1.msra.mxu0 0.0
        %1142 = vmatprep.subr.mxu0 0.0
        %1143 = vmatpush1.msra.mxu0 0.0
        %1144 = vmatprep.subr.mxu0 0.0
        %1145 = vmatpush1.msra.mxu0 0.0
        %1146 = vmatprep.subr.mxu0 0.0
        %1147 = vmatpush1.msra.mxu0 0.0
        %1148 = vmatprep.subr.mxu0 0.0
        %1149 = vmatpush1.msra.mxu0 0.0
        %1150 = vmatprep.subr.mxu0 0.0
        %1151 = vmatpush1.msra.mxu0 0.0
        %1152 = vmatprep.subr.mxu0 0.0
        %1153 = vmatpush1.msra.mxu0 0.0
        %1154 = vmatprep.subr.mxu0 0.0
        %1155 = vmatpush1.msra.mxu0 0.0
        %1156 = vmatprep.subr.mxu0 0.0
        %1157 = vmatpush1.msra.mxu0 0.0
        %1158 = vmatprep.subr.mxu0 0.0
        %1159 = vmatpush1.msra.mxu0 0.0
        %1160 = vmatprep.subr.mxu0 0.0
        %1161 = vmatpush1.msra.mxu0 0.0
        %1162 = vmatprep.subr.mxu0 0.0
        %1163 = vmatpush1.msra.mxu0 0.0
        %1164 = vmatprep.subr.mxu0 0.0
        %1165 = vmatpush1.msra.mxu0 0.0
        %1166 = vmatprep.subr.mxu0 0.0
        %1167 = vmatpush1.msra.mxu0 0.0
        %1168 = vmatprep.subr.mxu0 0.0
        %1169 = vmatpush1.msra.mxu0 0.0
        %1170 = vmatprep.subr.mxu0 0.0
        %1171 = vmatpush1.msra.mxu0 0.0
        %1172 = vmatprep.subr.mxu0 0.0
        %1173 = vmatpush1.msra.mxu0 0.0
        %1174 = vmatprep.subr.mxu0 0.0
        %1175 = vmatpush1.msra.mxu0 0.0
        %1176 = vmatprep.subr.mxu0 0.0
        %1177 = vmatpush1.msra.mxu0 0.0
        %1178 = vmatprep.subr.mxu0 0.0
        %1179 = vmatpush1.msra.mxu0 0.0
        %1180 = vmatprep.subr.mxu0 0.0
        %1181 = vmatpush1.msra.mxu0 0.0
        %1182 = vmatprep.subr.mxu0 0.0
        %1183 = vmatpush1.msra.mxu0 0.0
        %1184 = vmatprep.subr.mxu0 0.0
        %1185 = vmatpush1.msra.mxu0 0.0
        %1186 = vmatprep.subr.mxu0 0.0
        %1187 = vmatpush1.msra.mxu0 0.0
        %1188 = vmatprep.subr.mxu0 0.0
        %1189 = vmatpush1.msra.mxu0 0.0
        %1190 = vmatprep.subr.mxu0 0.0
        %1191 = vmatpush1.msra.mxu0 0.0
        %1192 = vmatprep.subr.mxu0 0.0
        %1193 = vmatpush1.msra.mxu0 0.0
        %1194 = vmatprep.subr.mxu0 0.0
        %1195 = vmatpush1.msra.mxu0 0.0
        %1196 = vmatprep.mubr.f32.mxu0 0.0
        %1197 = vmatmul.mubr.f32.gmra.mrb[0].mxu0 %v1085
        %v1198 = vpop.f32.mrb[0].mxu0
        %v1199 = vadd.f32 0.0, %v1198
        %v1200 = vpop.f32.mrb[0].mxu0
        %1201 = vmatprep.mubr.f32.mxu0 0.0
        %1202 = vmatmul.mubr.f32.gmra.mrb[0].mxu0 %v1088
        %v1203 = vpop.f32.mrb[0].mxu0
        %v1204 = vadd.f32 0.0, %v1203
        %v1205 = vpop.f32.mrb[0].mxu0
        %1206 = vmatprep.mubr.f32.mxu0 0.0
        %1207 = vmatmul.mubr.f32.gmra.mrb[0].mxu0 %v1091
        %v1208 = vpop.f32.mrb[0].mxu0
        %v1209 = vadd.f32 0.0, %v1208
        %v1210 = vpop.f32.mrb[0].mxu0
        %1211 = vmatprep.mubr.f32.mxu0 0.0
        %1212 = vmatmul.mubr.f32.gmra.mrb[0].mxu0 %v1094
        %v1213 = vpop.f32.mrb[0].mxu0
        %v1214 = vadd.f32 0.0, %v1213
        %v1215 = vpop.f32.mrb[0].mxu0
        %1216 = vmatprep.mubr.f32.mxu0 0.0
        %1217 = vmatmul.mubr.f32.gmra.mrb[0].mxu0 %v1097
        %v1218 = vpop.f32.mrb[0].mxu0
        %v1219 = vadd.f32 0.0, %v1218
        %v1220 = vpop.f32.mrb[0].mxu0
        %1221 = vmatprep.mubr.f32.mxu0 0.0
        %1222 = vmatmul.mubr.f32.gmra.mrb[0].mxu0 %v1100
        %v1223 = vpop.f32.mrb[0].mxu0
        %v1224 = vadd.f32 0.0, %v1223
        %v1225 = vpop.f32.mrb[0].mxu0
        %1226 = vmatprep.mubr.f32.mxu0 0.0
        %1227 = vmatmul.mubr.f32.gmra.mrb[0].mxu0 %v1103
        %v1228 = vpop.f32.mrb[0].mxu0
        %v1229 = vadd.f32 0.0, %v1228
        %v1230 = vpop.f32.mrb[0].mxu0
        %1231 = vmatprep.mubr.f32.mxu0 0.0
        %1232 = vmatmul.mubr.f32.gmra.mrb[0].mxu0 %v1106
        %v1233 = vpop.f32.mrb[0].mxu0
        %v1234 = vadd.f32 0.0, %v1233
        %v1235 = vpop.f32.mrb[0].mxu0
        %1236 = vmatprep.mubr.f32.mxu0 0.0
        %1237 = vmatmul.mubr.f32.gmra.mrb[0].mxu0 %v1109
        %v1238 = vpop.f32.mrb[0].mxu0
        %v1239 = vadd.f32 0.0, %v1238
        %v1240 = vpop.f32.mrb[0].mxu0
        %1241 = vmatprep.mubr.f32.mxu0 0.0
        %1242 = vmatmul.mubr.f32.gmra.mrb[0].mxu0 %v1112
        %v1243 = vpop.f32.mrb[0].mxu0
        %v1244 = vadd.f32 0.0, %v1243
        %v1245 = vpop.f32.mrb[0].mxu0
        %1246 = vmatprep.mubr.f32.mxu0 0.0
        %1247 = vmatmul.mubr.f32.gmra.mrb[0].mxu0 %v1115
        %v1248 = vpop.f32.mrb[0].mxu0
        %v1249 = vadd.f32 0.0, %v1248
        %v1250 = vpop.f32.mrb[0].mxu0
        %1251 = vmatprep.mubr.f32.mxu0 0.0
        %1252 = vmatmul.mubr.f32.gmra.mrb[0].mxu0 %v1118
        %v1253 = vpop.f32.mrb[0].mxu0
        %v1254 = vadd.f32 0.0, %v1253
        %v1255 = vpop.f32.mrb[0].mxu0
        %1256 = vmatprep.mubr.f32.mxu0 0.0
        %1257 = vmatmul.mubr.f32.gmra.mrb[0].mxu0 %v1121
        %v1258 = vpop.f32.mrb[0].mxu0
        %v1259 = vadd.f32 0.0, %v1258
        %v1260 = vpop.f32.mrb[0].mxu0
        %1261 = vmatprep.mubr.f32.mxu0 0.0
        %1262 = vmatmul.mubr.f32.gmra.mrb[0].mxu0 %v1124
        %v1263 = vpop.f32.mrb[0].mxu0
        %v1264 = vadd.f32 0.0, %v1263
        %v1265 = vpop.f32.mrb[0].mxu0
        %1266 = vmatprep.mubr.f32.mxu0 0.0
        %1267 = vmatmul.mubr.f32.gmra.mrb[0].mxu0 %v1127
        %v1268 = vpop.f32.mrb[0].mxu0
        %v1269 = vadd.f32 0.0, %v1268
        %v1270 = vpop.f32.mrb[0].mxu0
        %1271 = vmatprep.mubr.f32.mxu0 0.0
        %1272 = vmatmul.mubr.f32.gmra.mrb[0].mxu0 %v1130
        %v1273 = vpop.f32.mrb[0].mxu0
        %v1274 = vadd.f32 0.0, %v1273
        %v1275 = vpop.f32.mrb[0].mxu0
        %1276 = vdwg.mxu0
        %v1277 = vadd.f32 %v1050, %v1199
        %v1278 = vadd.f32 %v1051, %v1204
        %v1279 = vadd.f32 %v1052, %v1209
        %v1280 = vadd.f32 %v1053, %v1214
        %v1281 = vadd.f32 %v1054, %v1219
        %v1282 = vadd.f32 %v1055, %v1224
        %v1283 = vadd.f32 %v1056, %v1229
        %v1284 = vadd.f32 %v1057, %v1234
        %v1285 = vadd.f32 %v1058, %v1239
        %v1286 = vadd.f32 %v1059, %v1244
        %v1287 = vadd.f32 %v1060, %v1249
        %v1288 = vadd.f32 %v1061, %v1254
        %v1289 = vadd.f32 %v1062, %v1259
        %v1290 = vadd.f32 %v1063, %v1264
        %v1291 = vadd.f32 %v1064, %v1269
        %v1292 = vadd.f32 %v1065, %v1274
        %v1293 = vld [vmem:[%s838 + $0x2] sm:$0xff]
        %v1294 = vld [vmem:[%s838 + $0xa] sm:$0xff]
        %v1295 = vld [vmem:[%s838 + $0x1a] sm:$0xff]
        %v1296 = vld [vmem:[%s838 + $0x22] sm:$0xff]
        %v1297 = vld [vmem:[%s838 + $0x32] sm:$0xff]
        %v1298 = vld [vmem:[%s838 + $0x3a] sm:$0xff]
        %v1299 = vld [vmem:[%s838 + $0x4a] sm:$0xff]
        %v1300 = vld [vmem:[%s838 + $0x52] sm:$0xff]
        %v1301 = vld [vmem:[%s838 + $0x62] sm:$0xff]
        %v1302 = vld [vmem:[%s838 + $0x6a] sm:$0xff]
        %v1303 = vld [vmem:[%s838 + $0x7a] sm:$0xff]
        %v1304 = vld [vmem:[%s838 + $0x82] sm:$0xff]
        %v1305 = vld [vmem:[%s838 + $0x92] sm:$0xff]
        %v1306 = vld [vmem:[%s838 + $0x9a] sm:$0xff]
        %v1307 = vld [vmem:[%s838 + $0xaa] sm:$0xff]
        %v1308 = vld [vmem:[%s838 + $0xb2] sm:$0xff]
        %s1309 = scalar_lea.vmem %s1, 40
        %v1310 = vld [vmem:[%s1309] sm:$0xff]
        %v1312 = vsel %vm222, %v1293, 0
        %v1315 = vsel %vm222, %v1294, 0
        %v1318 = vsel %vm222, %v1295, 0
        %v1321 = vsel %vm222, %v1296, 0
        %v1324 = vsel %vm222, %v1297, 0
        %v1327 = vsel %vm222, %v1298, 0
        %v1330 = vsel %vm222, %v1299, 0
        %v1333 = vsel %vm222, %v1300, 0
        %v1336 = vsel %vm222, %v1301, 0
        %v1339 = vsel %vm222, %v1302, 0
        %v1342 = vsel %vm222, %v1303, 0
        %v1345 = vsel %vm222, %v1304, 0
        %v1348 = vsel %vm222, %v1305, 0
        %v1351 = vsel %vm222, %v1306, 0
        %v1354 = vsel %vm222, %v1307, 0
        %v1357 = vsel %vm222, %v1308, 0
        %1359 = vmatprep.subr.mxu0 0.0
        %1360 = vmatpush1.msra.mxu0 %v1310
        %1361 = vmatprep.subr.mxu0 0.0
        %1362 = vmatpush1.msra.mxu0 0.0
        %1363 = vmatprep.subr.mxu0 0.0
        %1364 = vmatpush1.msra.mxu0 0.0
        %1365 = vmatprep.subr.mxu0 0.0
        %1366 = vmatpush1.msra.mxu0 0.0
        %1367 = vmatprep.subr.mxu0 0.0
        %1368 = vmatpush1.msra.mxu0 0.0
        %1369 = vmatprep.subr.mxu0 0.0
        %1370 = vmatpush1.msra.mxu0 0.0
        %1371 = vmatprep.subr.mxu0 0.0
        %1372 = vmatpush1.msra.mxu0 0.0
        %1373 = vmatprep.subr.mxu0 0.0
        %1374 = vmatpush1.msra.mxu0 0.0
        %1375 = vmatprep.subr.mxu0 0.0
        %1376 = vmatpush1.msra.mxu0 0.0
        %1377 = vmatprep.subr.mxu0 0.0
        %1378 = vmatpush1.msra.mxu0 0.0
        %1379 = vmatprep.subr.mxu0 0.0
        %1380 = vmatpush1.msra.mxu0 0.0
        %1381 = vmatprep.subr.mxu0 0.0
        %1382 = vmatpush1.msra.mxu0 0.0
        %1383 = vmatprep.subr.mxu0 0.0
        %1384 = vmatpush1.msra.mxu0 0.0
        %1385 = vmatprep.subr.mxu0 0.0
        %1386 = vmatpush1.msra.mxu0 0.0
        %1387 = vmatprep.subr.mxu0 0.0
        %1388 = vmatpush1.msra.mxu0 0.0
        %1389 = vmatprep.subr.mxu0 0.0
        %1390 = vmatpush1.msra.mxu0 0.0
        %1391 = vmatprep.subr.mxu0 0.0
        %1392 = vmatpush1.msra.mxu0 0.0
        %1393 = vmatprep.subr.mxu0 0.0
        %1394 = vmatpush1.msra.mxu0 0.0
        %1395 = vmatprep.subr.mxu0 0.0
        %1396 = vmatpush1.msra.mxu0 0.0
        %1397 = vmatprep.subr.mxu0 0.0
        %1398 = vmatpush1.msra.mxu0 0.0
        %1399 = vmatprep.subr.mxu0 0.0
        %1400 = vmatpush1.msra.mxu0 0.0
        %1401 = vmatprep.subr.mxu0 0.0
        %1402 = vmatpush1.msra.mxu0 0.0
        %1403 = vmatprep.subr.mxu0 0.0
        %1404 = vmatpush1.msra.mxu0 0.0
        %1405 = vmatprep.subr.mxu0 0.0
        %1406 = vmatpush1.msra.mxu0 0.0
        %1407 = vmatprep.subr.mxu0 0.0
        %1408 = vmatpush1.msra.mxu0 0.0
        %1409 = vmatprep.subr.mxu0 0.0
        %1410 = vmatpush1.msra.mxu0 0.0
        %1411 = vmatprep.subr.mxu0 0.0
        %1412 = vmatpush1.msra.mxu0 0.0
        %1413 = vmatprep.subr.mxu0 0.0
        %1414 = vmatpush1.msra.mxu0 0.0
        %1415 = vmatprep.subr.mxu0 0.0
        %1416 = vmatpush1.msra.mxu0 0.0
        %1417 = vmatprep.subr.mxu0 0.0
        %1418 = vmatpush1.msra.mxu0 0.0
        %1419 = vmatprep.subr.mxu0 0.0
        %1420 = vmatpush1.msra.mxu0 0.0
        %1421 = vmatprep.subr.mxu0 0.0
        %1422 = vmatpush1.msra.mxu0 0.0
        %1423 = vmatprep.mubr.f32.mxu0 0.0
        %1424 = vmatmul.mubr.f32.gmra.mrb[0].mxu0 %v1312
        %v1425 = vpop.f32.mrb[0].mxu0
        %v1426 = vadd.f32 0.0, %v1425
        %v1427 = vpop.f32.mrb[0].mxu0
        %1428 = vmatprep.mubr.f32.mxu0 0.0
        %1429 = vmatmul.mubr.f32.gmra.mrb[0].mxu0 %v1315
        %v1430 = vpop.f32.mrb[0].mxu0
        %v1431 = vadd.f32 0.0, %v1430
        %v1432 = vpop.f32.mrb[0].mxu0
        %1433 = vmatprep.mubr.f32.mxu0 0.0
        %1434 = vmatmul.mubr.f32.gmra.mrb[0].mxu0 %v1318
        %v1435 = vpop.f32.mrb[0].mxu0
        %v1436 = vadd.f32 0.0, %v1435
        %v1437 = vpop.f32.mrb[0].mxu0
        %1438 = vmatprep.mubr.f32.mxu0 0.0
        %1439 = vmatmul.mubr.f32.gmra.mrb[0].mxu0 %v1321
        %v1440 = vpop.f32.mrb[0].mxu0
        %v1441 = vadd.f32 0.0, %v1440
        %v1442 = vpop.f32.mrb[0].mxu0
        %1443 = vmatprep.mubr.f32.mxu0 0.0
        %1444 = vmatmul.mubr.f32.gmra.mrb[0].mxu0 %v1324
        %v1445 = vpop.f32.mrb[0].mxu0
        %v1446 = vadd.f32 0.0, %v1445
        %v1447 = vpop.f32.mrb[0].mxu0
        %1448 = vmatprep.mubr.f32.mxu0 0.0
        %1449 = vmatmul.mubr.f32.gmra.mrb[0].mxu0 %v1327
        %v1450 = vpop.f32.mrb[0].mxu0
        %v1451 = vadd.f32 0.0, %v1450
        %v1452 = vpop.f32.mrb[0].mxu0
        %1453 = vmatprep.mubr.f32.mxu0 0.0
        %1454 = vmatmul.mubr.f32.gmra.mrb[0].mxu0 %v1330
        %v1455 = vpop.f32.mrb[0].mxu0
        %v1456 = vadd.f32 0.0, %v1455
        %v1457 = vpop.f32.mrb[0].mxu0
        %1458 = vmatprep.mubr.f32.mxu0 0.0
        %1459 = vmatmul.mubr.f32.gmra.mrb[0].mxu0 %v1333
        %v1460 = vpop.f32.mrb[0].mxu0
        %v1461 = vadd.f32 0.0, %v1460
        %v1462 = vpop.f32.mrb[0].mxu0
        %1463 = vmatprep.mubr.f32.mxu0 0.0
        %1464 = vmatmul.mubr.f32.gmra.mrb[0].mxu0 %v1336
        %v1465 = vpop.f32.mrb[0].mxu0
        %v1466 = vadd.f32 0.0, %v1465
        %v1467 = vpop.f32.mrb[0].mxu0
        %1468 = vmatprep.mubr.f32.mxu0 0.0
        %1469 = vmatmul.mubr.f32.gmra.mrb[0].mxu0 %v1339
        %v1470 = vpop.f32.mrb[0].mxu0
        %v1471 = vadd.f32 0.0, %v1470
        %v1472 = vpop.f32.mrb[0].mxu0
        %1473 = vmatprep.mubr.f32.mxu0 0.0
        %1474 = vmatmul.mubr.f32.gmra.mrb[0].mxu0 %v1342
        %v1475 = vpop.f32.mrb[0].mxu0
        %v1476 = vadd.f32 0.0, %v1475
        %v1477 = vpop.f32.mrb[0].mxu0
        %1478 = vmatprep.mubr.f32.mxu0 0.0
        %1479 = vmatmul.mubr.f32.gmra.mrb[0].mxu0 %v1345
        %v1480 = vpop.f32.mrb[0].mxu0
        %v1481 = vadd.f32 0.0, %v1480
        %v1482 = vpop.f32.mrb[0].mxu0
        %1483 = vmatprep.mubr.f32.mxu0 0.0
        %1484 = vmatmul.mubr.f32.gmra.mrb[0].mxu0 %v1348
        %v1485 = vpop.f32.mrb[0].mxu0
        %v1486 = vadd.f32 0.0, %v1485
        %v1487 = vpop.f32.mrb[0].mxu0
        %1488 = vmatprep.mubr.f32.mxu0 0.0
        %1489 = vmatmul.mubr.f32.gmra.mrb[0].mxu0 %v1351
        %v1490 = vpop.f32.mrb[0].mxu0
        %v1491 = vadd.f32 0.0, %v1490
        %v1492 = vpop.f32.mrb[0].mxu0
        %1493 = vmatprep.mubr.f32.mxu0 0.0
        %1494 = vmatmul.mubr.f32.gmra.mrb[0].mxu0 %v1354
        %v1495 = vpop.f32.mrb[0].mxu0
        %v1496 = vadd.f32 0.0, %v1495
        %v1497 = vpop.f32.mrb[0].mxu0
        %1498 = vmatprep.mubr.f32.mxu0 0.0
        %1499 = vmatmul.mubr.f32.gmra.mrb[0].mxu0 %v1357
        %v1500 = vpop.f32.mrb[0].mxu0
        %v1501 = vadd.f32 0.0, %v1500
        %v1502 = vpop.f32.mrb[0].mxu0
        %1503 = vdwg.mxu0
        %v1504 = vadd.f32 %v1277, %v1426
        %v1505 = vadd.f32 %v1278, %v1431
        %v1506 = vadd.f32 %v1279, %v1436
        %v1507 = vadd.f32 %v1280, %v1441
        %v1508 = vadd.f32 %v1281, %v1446
        %v1509 = vadd.f32 %v1282, %v1451
        %v1510 = vadd.f32 %v1283, %v1456
        %v1511 = vadd.f32 %v1284, %v1461
        %v1512 = vadd.f32 %v1285, %v1466
        %v1513 = vadd.f32 %v1286, %v1471
        %v1514 = vadd.f32 %v1287, %v1476
        %v1515 = vadd.f32 %v1288, %v1481
        %v1516 = vadd.f32 %v1289, %v1486
        %v1517 = vadd.f32 %v1290, %v1491
        %v1518 = vadd.f32 %v1291, %v1496
        %v1519 = vadd.f32 %v1292, %v1501
        %s1520 = sadd.s32 %s184, 2
        %s1521 = smul.u32 %s1520, 24
        %s1522 = scalar_lea.vmem %s182, %s1521
        %v1523 = vld [vmem:[%s1522] sm:$0xff]
        %v1524 = vld [vmem:[%s1522 + $0x8] sm:$0xff]
        %v1525 = vld [vmem:[%s1522 + $0x18] sm:$0xff]
        %v1526 = vld [vmem:[%s1522 + $0x20] sm:$0xff]
        %v1527 = vld [vmem:[%s1522 + $0x30] sm:$0xff]
        %v1528 = vld [vmem:[%s1522 + $0x38] sm:$0xff]
        %v1529 = vld [vmem:[%s1522 + $0x48] sm:$0xff]
        %v1530 = vld [vmem:[%s1522 + $0x50] sm:$0xff]
        %v1531 = vld [vmem:[%s1522 + $0x60] sm:$0xff]
        %v1532 = vld [vmem:[%s1522 + $0x68] sm:$0xff]
        %v1533 = vld [vmem:[%s1522 + $0x78] sm:$0xff]
        %v1534 = vld [vmem:[%s1522 + $0x80] sm:$0xff]
        %v1535 = vld [vmem:[%s1522 + $0x90] sm:$0xff]
        %v1536 = vld [vmem:[%s1522 + $0x98] sm:$0xff]
        %v1537 = vld [vmem:[%s1522 + $0xa8] sm:$0xff]
        %v1538 = vld [vmem:[%s1522 + $0xb0] sm:$0xff]
        %s1539 = scalar_lea.vmem %s1, 48
        %v1540 = vld [vmem:[%s1539] sm:$0xff]
        %v1542 = vsel %vm222, %v1523, 0
        %v1545 = vsel %vm222, %v1524, 0
        %v1548 = vsel %vm222, %v1525, 0
        %v1551 = vsel %vm222, %v1526, 0
        %v1554 = vsel %vm222, %v1527, 0
        %v1557 = vsel %vm222, %v1528, 0
        %v1560 = vsel %vm222, %v1529, 0
        %v1563 = vsel %vm222, %v1530, 0
        %v1566 = vsel %vm222, %v1531, 0
        %v1569 = vsel %vm222, %v1532, 0
        %v1572 = vsel %vm222, %v1533, 0
        %v1575 = vsel %vm222, %v1534, 0
        %v1578 = vsel %vm222, %v1535, 0
        %v1581 = vsel %vm222, %v1536, 0
        %v1584 = vsel %vm222, %v1537, 0
        %v1587 = vsel %vm222, %v1538, 0
        %1589 = vmatprep.subr.mxu0 0.0
        %1590 = vmatpush1.msra.mxu0 %v1540
        %1591 = vmatprep.subr.mxu0 0.0
        %1592 = vmatpush1.msra.mxu0 0.0
        %1593 = vmatprep.subr.mxu0 0.0
        %1594 = vmatpush1.msra.mxu0 0.0
        %1595 = vmatprep.subr.mxu0 0.0
        %1596 = vmatpush1.msra.mxu0 0.0
        %1597 = vmatprep.subr.mxu0 0.0
        %1598 = vmatpush1.msra.mxu0 0.0
        %1599 = vmatprep.subr.mxu0 0.0
        %1600 = vmatpush1.msra.mxu0 0.0
        %1601 = vmatprep.subr.mxu0 0.0
        %1602 = vmatpush1.msra.mxu0 0.0
        %1603 = vmatprep.subr.mxu0 0.0
        %1604 = vmatpush1.msra.mxu0 0.0
        %1605 = vmatprep.subr.mxu0 0.0
        %1606 = vmatpush1.msra.mxu0 0.0
        %1607 = vmatprep.subr.mxu0 0.0
        %1608 = vmatpush1.msra.mxu0 0.0
        %1609 = vmatprep.subr.mxu0 0.0
        %1610 = vmatpush1.msra.mxu0 0.0
        %1611 = vmatprep.subr.mxu0 0.0
        %1612 = vmatpush1.msra.mxu0 0.0
        %1613 = vmatprep.subr.mxu0 0.0
        %1614 = vmatpush1.msra.mxu0 0.0
        %1615 = vmatprep.subr.mxu0 0.0
        %1616 = vmatpush1.msra.mxu0 0.0
        %1617 = vmatprep.subr.mxu0 0.0
        %1618 = vmatpush1.msra.mxu0 0.0
        %1619 = vmatprep.subr.mxu0 0.0
        %1620 = vmatpush1.msra.mxu0 0.0
        %1621 = vmatprep.subr.mxu0 0.0
        %1622 = vmatpush1.msra.mxu0 0.0
        %1623 = vmatprep.subr.mxu0 0.0
        %1624 = vmatpush1.msra.mxu0 0.0
        %1625 = vmatprep.subr.mxu0 0.0
        %1626 = vmatpush1.msra.mxu0 0.0
        %1627 = vmatprep.subr.mxu0 0.0
        %1628 = vmatpush1.msra.mxu0 0.0
        %1629 = vmatprep.subr.mxu0 0.0
        %1630 = vmatpush1.msra.mxu0 0.0
        %1631 = vmatprep.subr.mxu0 0.0
        %1632 = vmatpush1.msra.mxu0 0.0
        %1633 = vmatprep.subr.mxu0 0.0
        %1634 = vmatpush1.msra.mxu0 0.0
        %1635 = vmatprep.subr.mxu0 0.0
        %1636 = vmatpush1.msra.mxu0 0.0
        %1637 = vmatprep.subr.mxu0 0.0
        %1638 = vmatpush1.msra.mxu0 0.0
        %1639 = vmatprep.subr.mxu0 0.0
        %1640 = vmatpush1.msra.mxu0 0.0
        %1641 = vmatprep.subr.mxu0 0.0
        %1642 = vmatpush1.msra.mxu0 0.0
        %1643 = vmatprep.subr.mxu0 0.0
        %1644 = vmatpush1.msra.mxu0 0.0
        %1645 = vmatprep.subr.mxu0 0.0
        %1646 = vmatpush1.msra.mxu0 0.0
        %1647 = vmatprep.subr.mxu0 0.0
        %1648 = vmatpush1.msra.mxu0 0.0
        %1649 = vmatprep.subr.mxu0 0.0
        %1650 = vmatpush1.msra.mxu0 0.0
        %1651 = vmatprep.subr.mxu0 0.0
        %1652 = vmatpush1.msra.mxu0 0.0
        %1653 = vmatprep.mubr.f32.mxu0 0.0
        %1654 = vmatmul.mubr.f32.gmra.mrb[0].mxu0 %v1542
        %v1655 = vpop.f32.mrb[0].mxu0
        %v1656 = vadd.f32 0.0, %v1655
        %v1657 = vpop.f32.mrb[0].mxu0
        %1658 = vmatprep.mubr.f32.mxu0 0.0
        %1659 = vmatmul.mubr.f32.gmra.mrb[0].mxu0 %v1545
        %v1660 = vpop.f32.mrb[0].mxu0
        %v1661 = vadd.f32 0.0, %v1660
        %v1662 = vpop.f32.mrb[0].mxu0
        %1663 = vmatprep.mubr.f32.mxu0 0.0
        %1664 = vmatmul.mubr.f32.gmra.mrb[0].mxu0 %v1548
        %v1665 = vpop.f32.mrb[0].mxu0
        %v1666 = vadd.f32 0.0, %v1665
        %v1667 = vpop.f32.mrb[0].mxu0
        %1668 = vmatprep.mubr.f32.mxu0 0.0
        %1669 = vmatmul.mubr.f32.gmra.mrb[0].mxu0 %v1551
        %v1670 = vpop.f32.mrb[0].mxu0
        %v1671 = vadd.f32 0.0, %v1670
        %v1672 = vpop.f32.mrb[0].mxu0
        %1673 = vmatprep.mubr.f32.mxu0 0.0
        %1674 = vmatmul.mubr.f32.gmra.mrb[0].mxu0 %v1554
        %v1675 = vpop.f32.mrb[0].mxu0
        %v1676 = vadd.f32 0.0, %v1675
        %v1677 = vpop.f32.mrb[0].mxu0
        %1678 = vmatprep.mubr.f32.mxu0 0.0
        %1679 = vmatmul.mubr.f32.gmra.mrb[0].mxu0 %v1557
        %v1680 = vpop.f32.mrb[0].mxu0
        %v1681 = vadd.f32 0.0, %v1680
        %v1682 = vpop.f32.mrb[0].mxu0
        %1683 = vmatprep.mubr.f32.mxu0 0.0
        %1684 = vmatmul.mubr.f32.gmra.mrb[0].mxu0 %v1560
        %v1685 = vpop.f32.mrb[0].mxu0
        %v1686 = vadd.f32 0.0, %v1685
        %v1687 = vpop.f32.mrb[0].mxu0
        %1688 = vmatprep.mubr.f32.mxu0 0.0
        %1689 = vmatmul.mubr.f32.gmra.mrb[0].mxu0 %v1563
        %v1690 = vpop.f32.mrb[0].mxu0
        %v1691 = vadd.f32 0.0, %v1690
        %v1692 = vpop.f32.mrb[0].mxu0
        %1693 = vmatprep.mubr.f32.mxu0 0.0
        %1694 = vmatmul.mubr.f32.gmra.mrb[0].mxu0 %v1566
        %v1695 = vpop.f32.mrb[0].mxu0
        %v1696 = vadd.f32 0.0, %v1695
        %v1697 = vpop.f32.mrb[0].mxu0
        %1698 = vmatprep.mubr.f32.mxu0 0.0
        %1699 = vmatmul.mubr.f32.gmra.mrb[0].mxu0 %v1569
        %v1700 = vpop.f32.mrb[0].mxu0
        %v1701 = vadd.f32 0.0, %v1700
        %v1702 = vpop.f32.mrb[0].mxu0
        %1703 = vmatprep.mubr.f32.mxu0 0.0
        %1704 = vmatmul.mubr.f32.gmra.mrb[0].mxu0 %v1572
        %v1705 = vpop.f32.mrb[0].mxu0
        %v1706 = vadd.f32 0.0, %v1705
        %v1707 = vpop.f32.mrb[0].mxu0
        %1708 = vmatprep.mubr.f32.mxu0 0.0
        %1709 = vmatmul.mubr.f32.gmra.mrb[0].mxu0 %v1575
        %v1710 = vpop.f32.mrb[0].mxu0
        %v1711 = vadd.f32 0.0, %v1710
        %v1712 = vpop.f32.mrb[0].mxu0
        %1713 = vmatprep.mubr.f32.mxu0 0.0
        %1714 = vmatmul.mubr.f32.gmra.mrb[0].mxu0 %v1578
        %v1715 = vpop.f32.mrb[0].mxu0
        %v1716 = vadd.f32 0.0, %v1715
        %v1717 = vpop.f32.mrb[0].mxu0
        %1718 = vmatprep.mubr.f32.mxu0 0.0
        %1719 = vmatmul.mubr.f32.gmra.mrb[0].mxu0 %v1581
        %v1720 = vpop.f32.mrb[0].mxu0
        %v1721 = vadd.f32 0.0, %v1720
        %v1722 = vpop.f32.mrb[0].mxu0
        %1723 = vmatprep.mubr.f32.mxu0 0.0
        %1724 = vmatmul.mubr.f32.gmra.mrb[0].mxu0 %v1584
        %v1725 = vpop.f32.mrb[0].mxu0
        %v1726 = vadd.f32 0.0, %v1725
        %v1727 = vpop.f32.mrb[0].mxu0
        %1728 = vmatprep.mubr.f32.mxu0 0.0
        %1729 = vmatmul.mubr.f32.gmra.mrb[0].mxu0 %v1587
        %v1730 = vpop.f32.mrb[0].mxu0
        %v1731 = vadd.f32 0.0, %v1730
        %v1732 = vpop.f32.mrb[0].mxu0
        %1733 = vdwg.mxu0
        %v1734 = vadd.f32 %v1504, %v1656
        %v1735 = vadd.f32 %v1505, %v1661
        %v1736 = vadd.f32 %v1506, %v1666
        %v1737 = vadd.f32 %v1507, %v1671
        %v1738 = vadd.f32 %v1508, %v1676
        %v1739 = vadd.f32 %v1509, %v1681
        %v1740 = vadd.f32 %v1510, %v1686
        %v1741 = vadd.f32 %v1511, %v1691
        %v1742 = vadd.f32 %v1512, %v1696
        %v1743 = vadd.f32 %v1513, %v1701
        %v1744 = vadd.f32 %v1514, %v1706
        %v1745 = vadd.f32 %v1515, %v1711
        %v1746 = vadd.f32 %v1516, %v1716
        %v1747 = vadd.f32 %v1517, %v1721
        %v1748 = vadd.f32 %v1518, %v1726
        %v1749 = vadd.f32 %v1519, %v1731
        %v1750 = vld [vmem:[%s1522 + $0x1] sm:$0xff]
        %v1751 = vld [vmem:[%s1522 + $0x9] sm:$0xff]
        %v1752 = vld [vmem:[%s1522 + $0x19] sm:$0xff]
        %v1753 = vld [vmem:[%s1522 + $0x21] sm:$0xff]
        %v1754 = vld [vmem:[%s1522 + $0x31] sm:$0xff]
        %v1755 = vld [vmem:[%s1522 + $0x39] sm:$0xff]
        %v1756 = vld [vmem:[%s1522 + $0x49] sm:$0xff]
        %v1757 = vld [vmem:[%s1522 + $0x51] sm:$0xff]
        %v1758 = vld [vmem:[%s1522 + $0x61] sm:$0xff]
        %v1759 = vld [vmem:[%s1522 + $0x69] sm:$0xff]
        %v1760 = vld [vmem:[%s1522 + $0x79] sm:$0xff]
        %v1761 = vld [vmem:[%s1522 + $0x81] sm:$0xff]
        %v1762 = vld [vmem:[%s1522 + $0x91] sm:$0xff]
        %v1763 = vld [vmem:[%s1522 + $0x99] sm:$0xff]
        %v1764 = vld [vmem:[%s1522 + $0xa9] sm:$0xff]
        %v1765 = vld [vmem:[%s1522 + $0xb1] sm:$0xff]
        %s1766 = scalar_lea.vmem %s1, 56
        %v1767 = vld [vmem:[%s1766] sm:$0xff]
        %v1769 = vsel %vm222, %v1750, 0
        %v1772 = vsel %vm222, %v1751, 0
        %v1775 = vsel %vm222, %v1752, 0
        %v1778 = vsel %vm222, %v1753, 0
        %v1781 = vsel %vm222, %v1754, 0
        %v1784 = vsel %vm222, %v1755, 0
        %v1787 = vsel %vm222, %v1756, 0
        %v1790 = vsel %vm222, %v1757, 0
        %v1793 = vsel %vm222, %v1758, 0
        %v1796 = vsel %vm222, %v1759, 0
        %v1799 = vsel %vm222, %v1760, 0
        %v1802 = vsel %vm222, %v1761, 0
        %v1805 = vsel %vm222, %v1762, 0
        %v1808 = vsel %vm222, %v1763, 0
        %v1811 = vsel %vm222, %v1764, 0
        %v1814 = vsel %vm222, %v1765, 0
        %1816 = vmatprep.subr.mxu0 0.0
        %1817 = vmatpush1.msra.mxu0 %v1767
        %1818 = vmatprep.subr.mxu0 0.0
        %1819 = vmatpush1.msra.mxu0 0.0
        %1820 = vmatprep.subr.mxu0 0.0
        %1821 = vmatpush1.msra.mxu0 0.0
        %1822 = vmatprep.subr.mxu0 0.0
        %1823 = vmatpush1.msra.mxu0 0.0
        %1824 = vmatprep.subr.mxu0 0.0
        %1825 = vmatpush1.msra.mxu0 0.0
        %1826 = vmatprep.subr.mxu0 0.0
        %1827 = vmatpush1.msra.mxu0 0.0
        %1828 = vmatprep.subr.mxu0 0.0
        %1829 = vmatpush1.msra.mxu0 0.0
        %1830 = vmatprep.subr.mxu0 0.0
        %1831 = vmatpush1.msra.mxu0 0.0
        %1832 = vmatprep.subr.mxu0 0.0
        %1833 = vmatpush1.msra.mxu0 0.0
        %1834 = vmatprep.subr.mxu0 0.0
        %1835 = vmatpush1.msra.mxu0 0.0
        %1836 = vmatprep.subr.mxu0 0.0
        %1837 = vmatpush1.msra.mxu0 0.0
        %1838 = vmatprep.subr.mxu0 0.0
        %1839 = vmatpush1.msra.mxu0 0.0
        %1840 = vmatprep.subr.mxu0 0.0
        %1841 = vmatpush1.msra.mxu0 0.0
        %1842 = vmatprep.subr.mxu0 0.0
        %1843 = vmatpush1.msra.mxu0 0.0
        %1844 = vmatprep.subr.mxu0 0.0
        %1845 = vmatpush1.msra.mxu0 0.0
        %1846 = vmatprep.subr.mxu0 0.0
        %1847 = vmatpush1.msra.mxu0 0.0
        %1848 = vmatprep.subr.mxu0 0.0
        %1849 = vmatpush1.msra.mxu0 0.0
        %1850 = vmatprep.subr.mxu0 0.0
        %1851 = vmatpush1.msra.mxu0 0.0
        %1852 = vmatprep.subr.mxu0 0.0
        %1853 = vmatpush1.msra.mxu0 0.0
        %1854 = vmatprep.subr.mxu0 0.0
        %1855 = vmatpush1.msra.mxu0 0.0
        %1856 = vmatprep.subr.mxu0 0.0
        %1857 = vmatpush1.msra.mxu0 0.0
        %1858 = vmatprep.subr.mxu0 0.0
        %1859 = vmatpush1.msra.mxu0 0.0
        %1860 = vmatprep.subr.mxu0 0.0
        %1861 = vmatpush1.msra.mxu0 0.0
        %1862 = vmatprep.subr.mxu0 0.0
        %1863 = vmatpush1.msra.mxu0 0.0
        %1864 = vmatprep.subr.mxu0 0.0
        %1865 = vmatpush1.msra.mxu0 0.0
        %1866 = vmatprep.subr.mxu0 0.0
        %1867 = vmatpush1.msra.mxu0 0.0
        %1868 = vmatprep.subr.mxu0 0.0
        %1869 = vmatpush1.msra.mxu0 0.0
        %1870 = vmatprep.subr.mxu0 0.0
        %1871 = vmatpush1.msra.mxu0 0.0
        %1872 = vmatprep.subr.mxu0 0.0
        %1873 = vmatpush1.msra.mxu0 0.0
        %1874 = vmatprep.subr.mxu0 0.0
        %1875 = vmatpush1.msra.mxu0 0.0
        %1876 = vmatprep.subr.mxu0 0.0
        %1877 = vmatpush1.msra.mxu0 0.0
        %1878 = vmatprep.subr.mxu0 0.0
        %1879 = vmatpush1.msra.mxu0 0.0
        %1880 = vmatprep.mubr.f32.mxu0 0.0
        %1881 = vmatmul.mubr.f32.gmra.mrb[0].mxu0 %v1769
        %v1882 = vpop.f32.mrb[0].mxu0
        %v1883 = vadd.f32 0.0, %v1882
        %v1884 = vpop.f32.mrb[0].mxu0
        %1885 = vmatprep.mubr.f32.mxu0 0.0
        %1886 = vmatmul.mubr.f32.gmra.mrb[0].mxu0 %v1772
        %v1887 = vpop.f32.mrb[0].mxu0
        %v1888 = vadd.f32 0.0, %v1887
        %v1889 = vpop.f32.mrb[0].mxu0
        %1890 = vmatprep.mubr.f32.mxu0 0.0
        %1891 = vmatmul.mubr.f32.gmra.mrb[0].mxu0 %v1775
        %v1892 = vpop.f32.mrb[0].mxu0
        %v1893 = vadd.f32 0.0, %v1892
        %v1894 = vpop.f32.mrb[0].mxu0
        %1895 = vmatprep.mubr.f32.mxu0 0.0
        %1896 = vmatmul.mubr.f32.gmra.mrb[0].mxu0 %v1778
        %v1897 = vpop.f32.mrb[0].mxu0
        %v1898 = vadd.f32 0.0, %v1897
        %v1899 = vpop.f32.mrb[0].mxu0
        %1900 = vmatprep.mubr.f32.mxu0 0.0
        %1901 = vmatmul.mubr.f32.gmra.mrb[0].mxu0 %v1781
        %v1902 = vpop.f32.mrb[0].mxu0
        %v1903 = vadd.f32 0.0, %v1902
        %v1904 = vpop.f32.mrb[0].mxu0
        %1905 = vmatprep.mubr.f32.mxu0 0.0
        %1906 = vmatmul.mubr.f32.gmra.mrb[0].mxu0 %v1784
        %v1907 = vpop.f32.mrb[0].mxu0
        %v1908 = vadd.f32 0.0, %v1907
        %v1909 = vpop.f32.mrb[0].mxu0
        %1910 = vmatprep.mubr.f32.mxu0 0.0
        %1911 = vmatmul.mubr.f32.gmra.mrb[0].mxu0 %v1787
        %v1912 = vpop.f32.mrb[0].mxu0
        %v1913 = vadd.f32 0.0, %v1912
        %v1914 = vpop.f32.mrb[0].mxu0
        %1915 = vmatprep.mubr.f32.mxu0 0.0
        %1916 = vmatmul.mubr.f32.gmra.mrb[0].mxu0 %v1790
        %v1917 = vpop.f32.mrb[0].mxu0
        %v1918 = vadd.f32 0.0, %v1917
        %v1919 = vpop.f32.mrb[0].mxu0
        %1920 = vmatprep.mubr.f32.mxu0 0.0
        %1921 = vmatmul.mubr.f32.gmra.mrb[0].mxu0 %v1793
        %v1922 = vpop.f32.mrb[0].mxu0
        %v1923 = vadd.f32 0.0, %v1922
        %v1924 = vpop.f32.mrb[0].mxu0
        %1925 = vmatprep.mubr.f32.mxu0 0.0
        %1926 = vmatmul.mubr.f32.gmra.mrb[0].mxu0 %v1796
        %v1927 = vpop.f32.mrb[0].mxu0
        %v1928 = vadd.f32 0.0, %v1927
        %v1929 = vpop.f32.mrb[0].mxu0
        %1930 = vmatprep.mubr.f32.mxu0 0.0
        %1931 = vmatmul.mubr.f32.gmra.mrb[0].mxu0 %v1799
        %v1932 = vpop.f32.mrb[0].mxu0
        %v1933 = vadd.f32 0.0, %v1932
        %v1934 = vpop.f32.mrb[0].mxu0
        %1935 = vmatprep.mubr.f32.mxu0 0.0
        %1936 = vmatmul.mubr.f32.gmra.mrb[0].mxu0 %v1802
        %v1937 = vpop.f32.mrb[0].mxu0
        %v1938 = vadd.f32 0.0, %v1937
        %v1939 = vpop.f32.mrb[0].mxu0
        %1940 = vmatprep.mubr.f32.mxu0 0.0
        %1941 = vmatmul.mubr.f32.gmra.mrb[0].mxu0 %v1805
        %v1942 = vpop.f32.mrb[0].mxu0
        %v1943 = vadd.f32 0.0, %v1942
        %v1944 = vpop.f32.mrb[0].mxu0
        %1945 = vmatprep.mubr.f32.mxu0 0.0
        %1946 = vmatmul.mubr.f32.gmra.mrb[0].mxu0 %v1808
        %v1947 = vpop.f32.mrb[0].mxu0
        %v1948 = vadd.f32 0.0, %v1947
        %v1949 = vpop.f32.mrb[0].mxu0
        %1950 = vmatprep.mubr.f32.mxu0 0.0
        %1951 = vmatmul.mubr.f32.gmra.mrb[0].mxu0 %v1811
        %v1952 = vpop.f32.mrb[0].mxu0
        %v1953 = vadd.f32 0.0, %v1952
        %v1954 = vpop.f32.mrb[0].mxu0
        %1955 = vmatprep.mubr.f32.mxu0 0.0
        %1956 = vmatmul.mubr.f32.gmra.mrb[0].mxu0 %v1814
        %v1957 = vpop.f32.mrb[0].mxu0
        %v1958 = vadd.f32 0.0, %v1957
        %v1959 = vpop.f32.mrb[0].mxu0
        %1960 = vdwg.mxu0
        %v1961 = vadd.f32 %v1734, %v1883
        %v1962 = vadd.f32 %v1735, %v1888
        %v1963 = vadd.f32 %v1736, %v1893
        %v1964 = vadd.f32 %v1737, %v1898
        %v1965 = vadd.f32 %v1738, %v1903
        %v1966 = vadd.f32 %v1739, %v1908
        %v1967 = vadd.f32 %v1740, %v1913
        %v1968 = vadd.f32 %v1741, %v1918
        %v1969 = vadd.f32 %v1742, %v1923
        %v1970 = vadd.f32 %v1743, %v1928
        %v1971 = vadd.f32 %v1744, %v1933
        %v1972 = vadd.f32 %v1745, %v1938
        %v1973 = vadd.f32 %v1746, %v1943
        %v1974 = vadd.f32 %v1747, %v1948
        %v1975 = vadd.f32 %v1748, %v1953
        %v1976 = vadd.f32 %v1749, %v1958
        %v1977 = vld [vmem:[%s1522 + $0x2] sm:$0xff]
        %v1978 = vld [vmem:[%s1522 + $0xa] sm:$0xff]
        %v1979 = vld [vmem:[%s1522 + $0x1a] sm:$0xff]
        %v1980 = vld [vmem:[%s1522 + $0x22] sm:$0xff]
        %v1981 = vld [vmem:[%s1522 + $0x32] sm:$0xff]
        %v1982 = vld [vmem:[%s1522 + $0x3a] sm:$0xff]
        %v1983 = vld [vmem:[%s1522 + $0x4a] sm:$0xff]
        %v1984 = vld [vmem:[%s1522 + $0x52] sm:$0xff]
        %v1985 = vld [vmem:[%s1522 + $0x62] sm:$0xff]
        %v1986 = vld [vmem:[%s1522 + $0x6a] sm:$0xff]
        %v1987 = vld [vmem:[%s1522 + $0x7a] sm:$0xff]
        %v1988 = vld [vmem:[%s1522 + $0x82] sm:$0xff]
        %v1989 = vld [vmem:[%s1522 + $0x92] sm:$0xff]
        %v1990 = vld [vmem:[%s1522 + $0x9a] sm:$0xff]
        %v1991 = vld [vmem:[%s1522 + $0xaa] sm:$0xff]
        %v1992 = vld [vmem:[%s1522 + $0xb2] sm:$0xff]
        %s1993 = scalar_lea.vmem %s1, 64
        %v1994 = vld [vmem:[%s1993] sm:$0xff]
        %v1996 = vsel %vm222, %v1977, 0
        %v1999 = vsel %vm222, %v1978, 0
        %v2002 = vsel %vm222, %v1979, 0
        %v2005 = vsel %vm222, %v1980, 0
        %v2008 = vsel %vm222, %v1981, 0
        %v2011 = vsel %vm222, %v1982, 0
        %v2014 = vsel %vm222, %v1983, 0
        %v2017 = vsel %vm222, %v1984, 0
        %v2020 = vsel %vm222, %v1985, 0
        %v2023 = vsel %vm222, %v1986, 0
        %v2026 = vsel %vm222, %v1987, 0
        %v2029 = vsel %vm222, %v1988, 0
        %v2032 = vsel %vm222, %v1989, 0
        %v2035 = vsel %vm222, %v1990, 0
        %v2038 = vsel %vm222, %v1991, 0
        %v2041 = vsel %vm222, %v1992, 0
        %2043 = vmatprep.subr.mxu0 0.0
        %2044 = vmatpush1.msra.mxu0 %v1994
        %2045 = vmatprep.subr.mxu0 0.0
        %2046 = vmatpush1.msra.mxu0 0.0
        %2047 = vmatprep.subr.mxu0 0.0
        %2048 = vmatpush1.msra.mxu0 0.0
        %2049 = vmatprep.subr.mxu0 0.0
        %2050 = vmatpush1.msra.mxu0 0.0
        %2051 = vmatprep.subr.mxu0 0.0
        %2052 = vmatpush1.msra.mxu0 0.0
        %2053 = vmatprep.subr.mxu0 0.0
        %2054 = vmatpush1.msra.mxu0 0.0
        %2055 = vmatprep.subr.mxu0 0.0
        %2056 = vmatpush1.msra.mxu0 0.0
        %2057 = vmatprep.subr.mxu0 0.0
        %2058 = vmatpush1.msra.mxu0 0.0
        %2059 = vmatprep.subr.mxu0 0.0
        %2060 = vmatpush1.msra.mxu0 0.0
        %2061 = vmatprep.subr.mxu0 0.0
        %2062 = vmatpush1.msra.mxu0 0.0
        %2063 = vmatprep.subr.mxu0 0.0
        %2064 = vmatpush1.msra.mxu0 0.0
        %2065 = vmatprep.subr.mxu0 0.0
        %2066 = vmatpush1.msra.mxu0 0.0
        %2067 = vmatprep.subr.mxu0 0.0
        %2068 = vmatpush1.msra.mxu0 0.0
        %2069 = vmatprep.subr.mxu0 0.0
        %2070 = vmatpush1.msra.mxu0 0.0
        %2071 = vmatprep.subr.mxu0 0.0
        %2072 = vmatpush1.msra.mxu0 0.0
        %2073 = vmatprep.subr.mxu0 0.0
        %2074 = vmatpush1.msra.mxu0 0.0
        %2075 = vmatprep.subr.mxu0 0.0
        %2076 = vmatpush1.msra.mxu0 0.0
        %2077 = vmatprep.subr.mxu0 0.0
        %2078 = vmatpush1.msra.mxu0 0.0
        %2079 = vmatprep.subr.mxu0 0.0
        %2080 = vmatpush1.msra.mxu0 0.0
        %2081 = vmatprep.subr.mxu0 0.0
        %2082 = vmatpush1.msra.mxu0 0.0
        %2083 = vmatprep.subr.mxu0 0.0
        %2084 = vmatpush1.msra.mxu0 0.0
        %2085 = vmatprep.subr.mxu0 0.0
        %2086 = vmatpush1.msra.mxu0 0.0
        %2087 = vmatprep.subr.mxu0 0.0
        %2088 = vmatpush1.msra.mxu0 0.0
        %2089 = vmatprep.subr.mxu0 0.0
        %2090 = vmatpush1.msra.mxu0 0.0
        %2091 = vmatprep.subr.mxu0 0.0
        %2092 = vmatpush1.msra.mxu0 0.0
        %2093 = vmatprep.subr.mxu0 0.0
        %2094 = vmatpush1.msra.mxu0 0.0
        %2095 = vmatprep.subr.mxu0 0.0
        %2096 = vmatpush1.msra.mxu0 0.0
        %2097 = vmatprep.subr.mxu0 0.0
        %2098 = vmatpush1.msra.mxu0 0.0
        %2099 = vmatprep.subr.mxu0 0.0
        %2100 = vmatpush1.msra.mxu0 0.0
        %2101 = vmatprep.subr.mxu0 0.0
        %2102 = vmatpush1.msra.mxu0 0.0
        %2103 = vmatprep.subr.mxu0 0.0
        %2104 = vmatpush1.msra.mxu0 0.0
        %2105 = vmatprep.subr.mxu0 0.0
        %2106 = vmatpush1.msra.mxu0 0.0
        %2107 = vmatprep.mubr.f32.mxu0 0.0
        %2108 = vmatmul.mubr.f32.gmra.mrb[0].mxu0 %v1996
        %v2109 = vpop.f32.mrb[0].mxu0
        %v2110 = vadd.f32 0.0, %v2109
        %v2111 = vpop.f32.mrb[0].mxu0
        %2112 = vmatprep.mubr.f32.mxu0 0.0
        %2113 = vmatmul.mubr.f32.gmra.mrb[0].mxu0 %v1999
        %v2114 = vpop.f32.mrb[0].mxu0
        %v2115 = vadd.f32 0.0, %v2114
        %v2116 = vpop.f32.mrb[0].mxu0
        %2117 = vmatprep.mubr.f32.mxu0 0.0
        %2118 = vmatmul.mubr.f32.gmra.mrb[0].mxu0 %v2002
        %v2119 = vpop.f32.mrb[0].mxu0
        %v2120 = vadd.f32 0.0, %v2119
        %v2121 = vpop.f32.mrb[0].mxu0
        %2122 = vmatprep.mubr.f32.mxu0 0.0
        %2123 = vmatmul.mubr.f32.gmra.mrb[0].mxu0 %v2005
        %v2124 = vpop.f32.mrb[0].mxu0
        %v2125 = vadd.f32 0.0, %v2124
        %v2126 = vpop.f32.mrb[0].mxu0
        %2127 = vmatprep.mubr.f32.mxu0 0.0
        %2128 = vmatmul.mubr.f32.gmra.mrb[0].mxu0 %v2008
        %v2129 = vpop.f32.mrb[0].mxu0
        %v2130 = vadd.f32 0.0, %v2129
        %v2131 = vpop.f32.mrb[0].mxu0
        %2132 = vmatprep.mubr.f32.mxu0 0.0
        %2133 = vmatmul.mubr.f32.gmra.mrb[0].mxu0 %v2011
        %v2134 = vpop.f32.mrb[0].mxu0
        %v2135 = vadd.f32 0.0, %v2134
        %v2136 = vpop.f32.mrb[0].mxu0
        %2137 = vmatprep.mubr.f32.mxu0 0.0
        %2138 = vmatmul.mubr.f32.gmra.mrb[0].mxu0 %v2014
        %v2139 = vpop.f32.mrb[0].mxu0
        %v2140 = vadd.f32 0.0, %v2139
        %v2141 = vpop.f32.mrb[0].mxu0
        %2142 = vmatprep.mubr.f32.mxu0 0.0
        %2143 = vmatmul.mubr.f32.gmra.mrb[0].mxu0 %v2017
        %v2144 = vpop.f32.mrb[0].mxu0
        %v2145 = vadd.f32 0.0, %v2144
        %v2146 = vpop.f32.mrb[0].mxu0
        %2147 = vmatprep.mubr.f32.mxu0 0.0
        %2148 = vmatmul.mubr.f32.gmra.mrb[0].mxu0 %v2020
        %v2149 = vpop.f32.mrb[0].mxu0
        %v2150 = vadd.f32 0.0, %v2149
        %v2151 = vpop.f32.mrb[0].mxu0
        %2152 = vmatprep.mubr.f32.mxu0 0.0
        %2153 = vmatmul.mubr.f32.gmra.mrb[0].mxu0 %v2023
        %v2154 = vpop.f32.mrb[0].mxu0
        %v2155 = vadd.f32 0.0, %v2154
        %v2156 = vpop.f32.mrb[0].mxu0
        %2157 = vmatprep.mubr.f32.mxu0 0.0
        %2158 = vmatmul.mubr.f32.gmra.mrb[0].mxu0 %v2026
        %v2159 = vpop.f32.mrb[0].mxu0
        %v2160 = vadd.f32 0.0, %v2159
        %v2161 = vpop.f32.mrb[0].mxu0
        %2162 = vmatprep.mubr.f32.mxu0 0.0
        %2163 = vmatmul.mubr.f32.gmra.mrb[0].mxu0 %v2029
        %v2164 = vpop.f32.mrb[0].mxu0
        %v2165 = vadd.f32 0.0, %v2164
        %v2166 = vpop.f32.mrb[0].mxu0
        %2167 = vmatprep.mubr.f32.mxu0 0.0
        %2168 = vmatmul.mubr.f32.gmra.mrb[0].mxu0 %v2032
        %v2169 = vpop.f32.mrb[0].mxu0
        %v2170 = vadd.f32 0.0, %v2169
        %v2171 = vpop.f32.mrb[0].mxu0
        %2172 = vmatprep.mubr.f32.mxu0 0.0
        %2173 = vmatmul.mubr.f32.gmra.mrb[0].mxu0 %v2035
        %v2174 = vpop.f32.mrb[0].mxu0
        %v2175 = vadd.f32 0.0, %v2174
        %v2176 = vpop.f32.mrb[0].mxu0
        %2177 = vmatprep.mubr.f32.mxu0 0.0
        %2178 = vmatmul.mubr.f32.gmra.mrb[0].mxu0 %v2038
        %v2179 = vpop.f32.mrb[0].mxu0
        %v2180 = vadd.f32 0.0, %v2179
        %v2181 = vpop.f32.mrb[0].mxu0
        %2182 = vmatprep.mubr.f32.mxu0 0.0
        %2183 = vmatmul.mubr.f32.gmra.mrb[0].mxu0 %v2041
        %v2184 = vpop.f32.mrb[0].mxu0
        %v2185 = vadd.f32 0.0, %v2184
        %v2186 = vpop.f32.mrb[0].mxu0
        %2187 = vdwg.mxu0
        %v2188 = vadd.f32 %v1961, %v2110
        %v2189 = vadd.f32 %v1962, %v2115
        %v2190 = vadd.f32 %v1963, %v2120
        %v2191 = vadd.f32 %v1964, %v2125
        %v2192 = vadd.f32 %v1965, %v2130
        %v2193 = vadd.f32 %v1966, %v2135
        %v2194 = vadd.f32 %v1967, %v2140
        %v2195 = vadd.f32 %v1968, %v2145
        %v2196 = vadd.f32 %v1969, %v2150
        %v2197 = vadd.f32 %v1970, %v2155
        %v2198 = vadd.f32 %v1971, %v2160
        %v2199 = vadd.f32 %v1972, %v2165
        %v2200 = vadd.f32 %v1973, %v2170
        %v2201 = vadd.f32 %v1974, %v2175
        %v2202 = vadd.f32 %v1975, %v2180
        %v2203 = vadd.f32 %v1976, %v2185
        %v2204 = vld [vmem:[%s2] sm:$0x1]
        %v2206 = vlaneseq
        %v2207 = vshrl.u32 %v2206, 7
        %v2208 = vsub.s32 0, %v2207
        %v2209 = vrot.slane %v2204, %v2208
        %v2211 = vadd.f32 %v2188, %v2209
        %v2212 = vadd.f32 %v2189, %v2209
        %v2213 = vadd.f32 %v2190, %v2209
        %v2214 = vadd.f32 %v2191, %v2209
        %v2215 = vadd.f32 %v2192, %v2209
        %v2216 = vadd.f32 %v2193, %v2209
        %v2217 = vadd.f32 %v2194, %v2209
        %v2218 = vadd.f32 %v2195, %v2209
        %v2219 = vadd.f32 %v2196, %v2209
        %v2220 = vadd.f32 %v2197, %v2209
        %v2221 = vadd.f32 %v2198, %v2209
        %v2222 = vadd.f32 %v2199, %v2209
        %v2223 = vadd.f32 %v2200, %v2209
        %v2224 = vadd.f32 %v2201, %v2209
        %v2225 = vadd.f32 %v2202, %v2209
        %v2226 = vadd.f32 %v2203, %v2209
        %v2227 = vmax.f32 %v2211, 0.0
        %v2228 = vmax.f32 %v2212, 0.0
        %v2229 = vmax.f32 %v2213, 0.0
        %v2230 = vmax.f32 %v2214, 0.0
        %v2231 = vmax.f32 %v2215, 0.0
        %v2232 = vmax.f32 %v2216, 0.0
        %v2233 = vmax.f32 %v2217, 0.0
        %v2234 = vmax.f32 %v2218, 0.0
        %v2235 = vmax.f32 %v2219, 0.0
        %v2236 = vmax.f32 %v2220, 0.0
        %v2237 = vmax.f32 %v2221, 0.0
        %v2238 = vmax.f32 %v2222, 0.0
        %v2239 = vmax.f32 %v2223, 0.0
        %v2240 = vmax.f32 %v2224, 0.0
        %v2241 = vmax.f32 %v2225, 0.0
        %v2242 = vmax.f32 %v2226, 0.0
        %2243 = vst [vmem:[%s177] sm:$0xff] %v2227
        %2244 = vst [vmem:[%s177 + $0x8] sm:$0xff] %v2228
        %2245 = vst [vmem:[%s177 + $0x10] sm:$0xff] %v2229
        %2246 = vst [vmem:[%s177 + $0x18] sm:$0xff] %v2230
        %2247 = vst [vmem:[%s177 + $0x20] sm:$0xff] %v2231
        %2248 = vst [vmem:[%s177 + $0x28] sm:$0xff] %v2232
        %2249 = vst [vmem:[%s177 + $0x30] sm:$0xff] %v2233
        %2250 = vst [vmem:[%s177 + $0x38] sm:$0xff] %v2234
        %2251 = vst [vmem:[%s177 + $0x40] sm:$0xff] %v2235
        %2252 = vst [vmem:[%s177 + $0x48] sm:$0xff] %v2236
        %2253 = vst [vmem:[%s177 + $0x50] sm:$0xff] %v2237
        %2254 = vst [vmem:[%s177 + $0x58] sm:$0xff] %v2238
        %2255 = vst [vmem:[%s177 + $0x60] sm:$0xff] %v2239
        %2256 = vst [vmem:[%s177 + $0x68] sm:$0xff] %v2240
        %2257 = vst [vmem:[%s177 + $0x70] sm:$0xff] %v2241
        %2258 = vst [vmem:[%s177 + $0x78] sm:$0xff] %v2242
        %s2259 = sand.u32 %s107, 1
        %s2260 = scalar_lea.sflag [#allocation3], %s2259
        %s2261 = sand.u32 %s107, 1
        %s2262 = smul.addr %s2261, 128
        %s2263 = scalar_lea.vmem [#allocation2], %s2262
        // Predicated region
        $region33: #{tpu_custom_call.1} parent=31 // pred_check
          %p2264 = pneg %p117
        $region34: #{tpu_custom_call.1} parent=31 // pred_check_branch
          %2266 = sbr.rel (%p2264) target = $region36
        $region35: #{tpu_custom_call.1} parent=31 // pred_region
          %s2267 = smul.u32 8, %s22
          %s2269 = ssub.s32 2048, 2048
          %2270 = vsyncadd %s2260, %s2269
          %s2271 = smul.addr %s2267, 2
          %s2272 = smul.addr %s21, 32
          %s2273 = sadd.s32 %s2271, %s2272
          %s2274 = smul.addr %s2273, 128
          %s2275 = scalar_lea.hbm %s3, %s2274
          %s2276 = sshll.u32 %s2263, 4
          %s2277 = int_to_ptr.vmem [resolvable:$true] %s2276
          %2282 = dma.vmem_to_hbm [thread:$0]  %s2277, 2048, %s2275, %s2260, 128, 128, 8
        $region36: #{tpu_custom_call.1} parent=31 // pred_fallthru
          _
      $region32: #{tpu_custom_call.1} parent=5 // pred_fallthru
        _
      %p2283 = scmp.le.s32.totalorder 2, %s12
      // Predicated region
      $region37: #{tpu_custom_call.1} parent=5 // pred_check
        %p2284 = pneg %p2283
      $region38: #{tpu_custom_call.1} parent=5 // pred_check_branch
        %2286 = sbr.rel (%p2284) target = $region40
      $region39: #{tpu_custom_call.1} parent=5 // pred_region
        %s2287 = ssub.s32 %s12, 2
        // Predicated region
        $region41: #{tpu_custom_call.1} parent=39 // pred_check
          %p2288 = pneg %p123
        $region42: #{tpu_custom_call.1} parent=39 // pred_check_branch
          %2290 = sbr.rel (%p2288) target = $region44
        $region43: #{tpu_custom_call.1} parent=39 // pred_region
          %s2291 = sand.u32 %s108, 1
          %s2292 = scalar_lea.sflag [#allocation3], %s2291
          %s2293 = sand.u32 %s108, 1
          %s2294 = smul.addr %s2293, 128
          %s2295 = scalar_lea.vmem [#allocation2], %s2294
          %2296 = dma.done %s2292, 2048
        $region44: #{tpu_custom_call.1} parent=39 // pred_fallthru
          _
      $region40: #{tpu_custom_call.1} parent=5 // pred_fallthru
        _
    $region6: #{tpu_custom_call.1} parent=1 // loop_footer
      %s16 = sadd.s32 1, %s12
    $region7: #{tpu_custom_call.1} parent=1 // loop_footer_branch
      %11 = sbr.rel target = $region3
    $region8: #{tpu_custom_call.1} parent=1 // loop_exit
      _
    %2297 = vsyncpa [#allocation3], 1
    %s2298 = scalar_lea.sflag [#allocation3], 1
    %2299 = vsyncpa %s2298, 1

</llo_original>
